<compile_context>
chip_gen: v7x
topology: tpu7x:2x2x1
jax: 0.10.0
libtpu: 0.0.40
codegen_flags: <defaults>
</compile_context>

<pallas_src>
import jax
import jax.numpy as jnp
import numpy as np
from jax.experimental import pallas as pl
from jax.experimental.pallas import tpu as pltpu


# ----------------------------------------------------------------------------
# Fused kernel: whole-sequence input projection + LSTM recurrence + MLP head.
# ----------------------------------------------------------------------------
def _fused_lstm_mlp_kernel(x_ref, wih_ref, whh_ref, b_ref,
                           w1_ref, b1_ref, w2_ref, b2_ref,
                           w3_ref, b3_ref, w4_ref, b4_ref, out_ref):
    B = out_ref.shape[0]
    T = x_ref.shape[0] // B          # x_ref is time-major rows: (T*B, D)
    H = whh_ref.shape[0]

    # Hoisted: input projection (+ folded b_ih + b_hh) for ALL timesteps in
    # one MXU matmul, off the recurrence critical path.
    #   xp[t*B + b, :] = x[b, t, :] @ W_ih^T + (b_ih + b_hh)
    xp = (jnp.dot(x_ref[...], wih_ref[...], preferred_element_type=jnp.float32)
          + b_ref[...])                                      # (T*B, 4H)

    w_hh = whh_ref[...]                                      # hoisted weight load

    h = jnp.zeros((B, H), jnp.float32)
    c = jnp.zeros((B, H), jnp.float32)

    # Statically unrolled time loop (T is small): per step only ONE small
    # matmul (h @ W_hh^T) plus elementwise work.  Gate column order is
    # (i, f, o, g): one contiguous sigmoid covers i|f|o, one tanh covers g.
    for t in range(T):
        gates = xp[t * B:(t + 1) * B, :] + jnp.dot(
            h, w_hh, preferred_element_type=jnp.float32)     # (B, 4H)
        s = jax.nn.sigmoid(gates[:, :3 * H])                 # i | f | o
        g = jnp.tanh(gates[:, 3 * H:])                       # g
        c = s[:, H:2 * H] * c + s[:, :H] * g                 # f*c + i*g
        h = s[:, 2 * H:] * jnp.tanh(c)                       # o*tanh(c)

    # MLP head fused into the same kernel:
    #   relu -> fc_1 -> fc_2 -> fc_3 -> relu -> fc
    z = jnp.maximum(h, 0.0)
    z = jnp.dot(z, w1_ref[...], preferred_element_type=jnp.float32) + b1_ref[...]
    z = jnp.dot(z, w2_ref[...], preferred_element_type=jnp.float32) + b2_ref[...]
    z = jnp.dot(z, w3_ref[...], preferred_element_type=jnp.float32) + b3_ref[...]
    z = jnp.maximum(z, 0.0)
    out_ref[...] = (jnp.dot(z, w4_ref[...], preferred_element_type=jnp.float32)
                    + b4_ref[...])


# ----------------------------------------------------------------------------
# Wrapper: single pallas_call, all operands as full VMEM blocks (no grid).
# ----------------------------------------------------------------------------
@jax.jit
def lstm_module_forward(x_btd, params):
    B, T, D = x_btd.shape
    C = params["w_fc"].shape[1]
    # Time-major flatten: row t*B + b holds x[b, t, :].  Tiny (T*B, D) copy,
    # fused into this jit; lets the kernel do one whole-sequence projection
    # matmul and read each step with a static slice.
    x_tm = jnp.transpose(x_btd, (1, 0, 2)).reshape(T * B, D)

    args = (x_tm,
            params["w_ih_t"], params["w_hh_t"], params["bias"],
            params["w_fc1"], params["b_fc1"],
            params["w_fc2"], params["b_fc2"],
            params["w_fc3"], params["b_fc3"],
            params["w_fc"], params["b_fc"])
    vmem = pl.BlockSpec(memory_space=pltpu.MemorySpace.VMEM)
    return pl.pallas_call(
        _fused_lstm_mlp_kernel,
        out_shape=jax.ShapeDtypeStruct((B, C), jnp.float32),
        in_specs=[vmem] * len(args),
        out_specs=vmem,
    )(*args)


# ----------------------------------------------------------------------------
# Parameter init (PyTorch layout) + kernel-friendly repacking.
# ----------------------------------------------------------------------------
def init_torch_params(key, input_size, hidden_size, num_classes):
    """PyTorch-layout params: weights (out, in); LSTM gate order (i, f, g, o)."""
    H = hidden_size

    def u(k, shape, fan_in):
        b = 1.0 / np.sqrt(fan_in)
        return jax.random.uniform(k, shape, jnp.float32, -b, b)

    ks = jax.random.split(key, 12)
    return {
        "w_ih": u(ks[0], (4 * H, input_size), H),
        "w_hh": u(ks[1], (4 * H, H), H),
        "b_ih": u(ks[2], (4 * H,), H),
        "b_hh": u(ks[3], (4 * H,), H),
        "fc1_w": u(ks[4], (256, H), H),       "fc1_b": u(ks[5], (256,), H),
        "fc2_w": u(ks[6], (256, 256), 256),   "fc2_b": u(ks[7], (256,), 256),
        "fc3_w": u(ks[8], (128, 256), 256),   "fc3_b": u(ks[9], (128,), 256),
        "fc_w":  u(ks[10], (num_classes, 128), 128),
        "fc_b":  u(ks[11], (num_classes,), 128),
    }


def prepare_kernel_params(tp):
    """Kernel layout: (in, out) weights, fused LSTM bias, gate order (i,f,o,g)."""
    H = tp["w_hh"].shape[1]
    # Reorder gate blocks (i, f, g, o) -> (i, f, o, g) once at init time.
    perm = np.concatenate([np.arange(0, 2 * H),        # i, f
                           np.arange(3 * H, 4 * H),    # o
                           np.arange(2 * H, 3 * H)])   # g
    w_ih_r = tp["w_ih"][perm]                          # (4H, D)
    w_hh_r = tp["w_hh"][perm]                          # (4H, H)
    bias_r = (tp["b_ih"] + tp["b_hh"])[perm]           # (4H,)
    return {
        "w_ih_t": w_ih_r.T,                            # (D, 4H)
        "w_hh_t": w_hh_r.T,                            # (H, 4H)
        "bias":   bias_r[None, :],                     # (1, 4H)
        "w_fc1": tp["fc1_w"].T, "b_fc1": tp["fc1_b"][None, :],
        "w_fc2": tp["fc2_w"].T, "b_fc2": tp["fc2_b"][None, :],
        "w_fc3": tp["fc3_w"].T, "b_fc3": tp["fc3_b"][None, :],
        "w_fc":  tp["fc_w"].T,  "b_fc":  tp["fc_b"][None, :],
    }


# ----------------------------------------------------------------------------
# Pure-JAX reference (PyTorch semantics) for the correctness check.
# ----------------------------------------------------------------------------
def reference_forward(x_btd, tp):
    B = x_btd.shape[0]
    H = tp["w_hh"].shape[1]
    w_ih_t, w_hh_t = tp["w_ih"].T, tp["w_hh"].T
    b = tp["b_ih"] + tp["b_hh"]

    def step(carry, x_t):
        h, c = carry
        gates = x_t @ w_ih_t + h @ w_hh_t + b
        i, f, g, o = jnp.split(gates, 4, axis=-1)
        c = jax.nn.sigmoid(f) * c + jax.nn.sigmoid(i) * jnp.tanh(g)
        h = jax.nn.sigmoid(o) * jnp.tanh(c)
        return (h, c), None

    z = jnp.zeros((B, H), jnp.float32)
    (hn, _), _ = jax.lax.scan(step, (z, z), jnp.transpose(x_btd, (1, 0, 2)))

    out = jnp.maximum(hn, 0.0)
    out = out @ tp["fc1_w"].T + tp["fc1_b"]
    out = out @ tp["fc2_w"].T + tp["fc2_b"]
    out = out @ tp["fc3_w"].T + tp["fc3_b"]
    out = jnp.maximum(out, 0.0)
    return out @ tp["fc_w"].T + tp["fc_b"]


if __name__ == "__main__":
    # Small shapes consistent with the module: input_size=12, num_classes=4.
    B, T, D, H, C = 4, 8, 12, 32, 4

    key = jax.random.PRNGKey(0)
    k_x, k_p = jax.random.split(key)
    x = jax.random.normal(k_x, (B, T, D), jnp.float32)

    torch_params = init_torch_params(k_p, D, H, C)
    kernel_params = prepare_kernel_params(torch_params)

    out = lstm_module_forward(x, kernel_params)
    out = jax.block_until_ready(out)
    assert out.shape == (B, C)

    ref = reference_forward(x, torch_params)
    np.testing.assert_allclose(np.asarray(out), np.asarray(ref),
                               rtol=1e-4, atol=1e-4)
    print("KERNEL_OK")
</pallas_src>

<mosaic_0001>
module attributes {stable_mosaic.version = 11 : i64} {
  func.func @_fused_lstm_mlp_kernel(%arg0: memref<32x12xf32, #tpu.memory_space<vmem>>, %arg1: memref<12x128xf32, #tpu.memory_space<vmem>>, %arg2: memref<32x128xf32, #tpu.memory_space<vmem>>, %arg3: memref<1x128xf32, #tpu.memory_space<vmem>>, %arg4: memref<32x256xf32, #tpu.memory_space<vmem>>, %arg5: memref<1x256xf32, #tpu.memory_space<vmem>>, %arg6: memref<256x256xf32, #tpu.memory_space<vmem>>, %arg7: memref<1x256xf32, #tpu.memory_space<vmem>>, %arg8: memref<256x128xf32, #tpu.memory_space<vmem>>, %arg9: memref<1x128xf32, #tpu.memory_space<vmem>>, %arg10: memref<128x4xf32, #tpu.memory_space<vmem>>, %arg11: memref<1x4xf32, #tpu.memory_space<vmem>>, %arg12: memref<4x4xf32, #tpu.memory_space<vmem>>) attributes {dimension_semantics = [], scalar_prefetch = 0 : i64, scratch_operands = 0 : i64, tpu.core_type = #tpu.core_type<tc>} {
    %c0 = arith.constant 0 : index
    %c0_0 = arith.constant 0 : index
    %0 = vector.load %arg0[%c0, %c0_0] : memref<32x12xf32, #tpu.memory_space<vmem>>, vector<32x12xf32>
    %c0_1 = arith.constant 0 : index
    %c0_2 = arith.constant 0 : index
    %1 = vector.load %arg1[%c0_1, %c0_2] : memref<12x128xf32, #tpu.memory_space<vmem>>, vector<12x128xf32>
    %cst = arith.constant dense<0.000000e+00> : vector<32x128xf32>
    %2 = tpu.matmul %0, %1, %cst {dimension_numbers = #tpu.dot_dimension_numbers<[1], [0], [0], [1], [0, 0, 1, 1], [], []>} : vector<32x12xf32>, vector<12x128xf32>, vector<32x128xf32> -> vector<32x128xf32>
    %c0_3 = arith.constant 0 : index
    %c0_4 = arith.constant 0 : index
    %3 = vector.load %arg3[%c0_3, %c0_4] : memref<1x128xf32, #tpu.memory_space<vmem>>, vector<1x128xf32>
    %4 = vector.broadcast %3 : vector<1x128xf32> to vector<32x128xf32>
    %5 = arith.addf %2, %4 : vector<32x128xf32>
    %c0_5 = arith.constant 0 : index
    %c0_6 = arith.constant 0 : index
    %6 = vector.load %arg2[%c0_5, %c0_6] : memref<32x128xf32, #tpu.memory_space<vmem>>, vector<32x128xf32>
    %cst_7 = arith.constant 0.000000e+00 : f32
    %7 = vector.broadcast %cst_7 : f32 to vector<4x32xf32>
    %cst_8 = arith.constant 0.000000e+00 : f32
    %8 = vector.broadcast %cst_8 : f32 to vector<4x32xf32>
    %9 = vector.extract_strided_slice %5 {offsets = [0, 0], sizes = [4, 128], strides = [1, 1]} : vector<32x128xf32> to vector<4x128xf32>
    %cst_9 = arith.constant dense<0.000000e+00> : vector<4x128xf32>
    %10 = tpu.matmul %7, %6, %cst_9 {dimension_numbers = #tpu.dot_dimension_numbers<[1], [0], [0], [1], [0, 0, 1, 1], [], []>} : vector<4x32xf32>, vector<32x128xf32>, vector<4x128xf32> -> vector<4x128xf32>
    %11 = arith.addf %9, %10 : vector<4x128xf32>
    %12 = vector.extract_strided_slice %11 {offsets = [0, 0], sizes = [4, 96], strides = [1, 1]} : vector<4x128xf32> to vector<4x96xf32>
    %13 = arith.negf %12 : vector<4x96xf32>
    %14 = math.exp %13 : vector<4x96xf32>
    %cst_10 = arith.constant 1.000000e+00 : f32
    %15 = vector.broadcast %cst_10 : f32 to vector<4x96xf32>
    %16 = arith.addf %15, %14 : vector<4x96xf32>
    %17 = arith.divf %15, %16 : vector<4x96xf32>
    %18 = vector.extract_strided_slice %11 {offsets = [0, 96], sizes = [4, 32], strides = [1, 1]} : vector<4x128xf32> to vector<4x32xf32>
    %19 = math.tanh %18 : vector<4x32xf32>
    %20 = vector.extract_strided_slice %17 {offsets = [0, 32], sizes = [4, 32], strides = [1, 1]} : vector<4x96xf32> to vector<4x32xf32>
    %21 = arith.mulf %20, %8 : vector<4x32xf32>
    %22 = vector.extract_strided_slice %17 {offsets = [0, 0], sizes = [4, 32], strides = [1, 1]} : vector<4x96xf32> to vector<4x32xf32>
    %23 = arith.mulf %22, %19 : vector<4x32xf32>
    %24 = arith.addf %21, %23 : vector<4x32xf32>
    %25 = vector.extract_strided_slice %17 {offsets = [0, 64], sizes = [4, 32], strides = [1, 1]} : vector<4x96xf32> to vector<4x32xf32>
    %26 = math.tanh %24 : vector<4x32xf32>
    %27 = arith.mulf %25, %26 : vector<4x32xf32>
    %28 = vector.extract_strided_slice %5 {offsets = [4, 0], sizes = [4, 128], strides = [1, 1]} : vector<32x128xf32> to vector<4x128xf32>
    %cst_11 = arith.constant dense<0.000000e+00> : vector<4x128xf32>
    %29 = tpu.matmul %27, %6, %cst_11 {dimension_numbers = #tpu.dot_dimension_numbers<[1], [0], [0], [1], [0, 0, 1, 1], [], []>} : vector<4x32xf32>, vector<32x128xf32>, vector<4x128xf32> -> vector<4x128xf32>
    %30 = arith.addf %28, %29 : vector<4x128xf32>
    %31 = vector.extract_strided_slice %30 {offsets = [0, 0], sizes = [4, 96], strides = [1, 1]} : vector<4x128xf32> to vector<4x96xf32>
    %32 = arith.negf %31 : vector<4x96xf32>
    %33 = math.exp %32 : vector<4x96xf32>
    %cst_12 = arith.constant 1.000000e+00 : f32
    %34 = vector.broadcast %cst_12 : f32 to vector<4x96xf32>
    %35 = arith.addf %34, %33 : vector<4x96xf32>
    %36 = arith.divf %34, %35 : vector<4x96xf32>
    %37 = vector.extract_strided_slice %30 {offsets = [0, 96], sizes = [4, 32], strides = [1, 1]} : vector<4x128xf32> to vector<4x32xf32>
    %38 = math.tanh %37 : vector<4x32xf32>
    %39 = vector.extract_strided_slice %36 {offsets = [0, 32], sizes = [4, 32], strides = [1, 1]} : vector<4x96xf32> to vector<4x32xf32>
    %40 = arith.mulf %39, %24 : vector<4x32xf32>
    %41 = vector.extract_strided_slice %36 {offsets = [0, 0], sizes = [4, 32], strides = [1, 1]} : vector<4x96xf32> to vector<4x32xf32>
    %42 = arith.mulf %41, %38 : vector<4x32xf32>
    %43 = arith.addf %40, %42 : vector<4x32xf32>
    %44 = vector.extract_strided_slice %36 {offsets = [0, 64], sizes = [4, 32], strides = [1, 1]} : vector<4x96xf32> to vector<4x32xf32>
    %45 = math.tanh %43 : vector<4x32xf32>
    %46 = arith.mulf %44, %45 : vector<4x32xf32>
    %47 = vector.extract_strided_slice %5 {offsets = [8, 0], sizes = [4, 128], strides = [1, 1]} : vector<32x128xf32> to vector<4x128xf32>
    %cst_13 = arith.constant dense<0.000000e+00> : vector<4x128xf32>
    %48 = tpu.matmul %46, %6, %cst_13 {dimension_numbers = #tpu.dot_dimension_numbers<[1], [0], [0], [1], [0, 0, 1, 1], [], []>} : vector<4x32xf32>, vector<32x128xf32>, vector<4x128xf32> -> vector<4x128xf32>
    %49 = arith.addf %47, %48 : vector<4x128xf32>
    %50 = vector.extract_strided_slice %49 {offsets = [0, 0], sizes = [4, 96], strides = [1, 1]} : vector<4x128xf32> to vector<4x96xf32>
    %51 = arith.negf %50 : vector<4x96xf32>
    %52 = math.exp %51 : vector<4x96xf32>
    %cst_14 = arith.constant 1.000000e+00 : f32
    %53 = vector.broadcast %cst_14 : f32 to vector<4x96xf32>
    %54 = arith.addf %53, %52 : vector<4x96xf32>
    %55 = arith.divf %53, %54 : vector<4x96xf32>
    %56 = vector.extract_strided_slice %49 {offsets = [0, 96], sizes = [4, 32], strides = [1, 1]} : vector<4x128xf32> to vector<4x32xf32>
    %57 = math.tanh %56 : vector<4x32xf32>
    %58 = vector.extract_strided_slice %55 {offsets = [0, 32], sizes = [4, 32], strides = [1, 1]} : vector<4x96xf32> to vector<4x32xf32>
    %59 = arith.mulf %58, %43 : vector<4x32xf32>
    %60 = vector.extract_strided_slice %55 {offsets = [0, 0], sizes = [4, 32], strides = [1, 1]} : vector<4x96xf32> to vector<4x32xf32>
    %61 = arith.mulf %60, %57 : vector<4x32xf32>
    %62 = arith.addf %59, %61 : vector<4x32xf32>
    %63 = vector.extract_strided_slice %55 {offsets = [0, 64], sizes = [4, 32], strides = [1, 1]} : vector<4x96xf32> to vector<4x32xf32>
    %64 = math.tanh %62 : vector<4x32xf32>
    %65 = arith.mulf %63, %64 : vector<4x32xf32>
    %66 = vector.extract_strided_slice %5 {offsets = [12, 0], sizes = [4, 128], strides = [1, 1]} : vector<32x128xf32> to vector<4x128xf32>
    %cst_15 = arith.constant dense<0.000000e+00> : vector<4x128xf32>
    %67 = tpu.matmul %65, %6, %cst_15 {dimension_numbers = #tpu.dot_dimension_numbers<[1], [0], [0], [1], [0, 0, 1, 1], [], []>} : vector<4x32xf32>, vector<32x128xf32>, vector<4x128xf32> -> vector<4x128xf32>
    %68 = arith.addf %66, %67 : vector<4x128xf32>
    %69 = vector.extract_strided_slice %68 {offsets = [0, 0], sizes = [4, 96], strides = [1, 1]} : vector<4x128xf32> to vector<4x96xf32>
    %70 = arith.negf %69 : vector<4x96xf32>
    %71 = math.exp %70 : vector<4x96xf32>
    %cst_16 = arith.constant 1.000000e+00 : f32
    %72 = vector.broadcast %cst_16 : f32 to vector<4x96xf32>
    %73 = arith.addf %72, %71 : vector<4x96xf32>
    %74 = arith.divf %72, %73 : vector<4x96xf32>
    %75 = vector.extract_strided_slice %68 {offsets = [0, 96], sizes = [4, 32], strides = [1, 1]} : vector<4x128xf32> to vector<4x32xf32>
    %76 = math.tanh %75 : vector<4x32xf32>
    %77 = vector.extract_strided_slice %74 {offsets = [0, 32], sizes = [4, 32], strides = [1, 1]} : vector<4x96xf32> to vector<4x32xf32>
    %78 = arith.mulf %77, %62 : vector<4x32xf32>
    %79 = vector.extract_strided_slice %74 {offsets = [0, 0], sizes = [4, 32], strides = [1, 1]} : vector<4x96xf32> to vector<4x32xf32>
    %80 = arith.mulf %79, %76 : vector<4x32xf32>
    %81 = arith.addf %78, %80 : vector<4x32xf32>
    %82 = vector.extract_strided_slice %74 {offsets = [0, 64], sizes = [4, 32], strides = [1, 1]} : vector<4x96xf32> to vector<4x32xf32>
    %83 = math.tanh %81 : vector<4x32xf32>
    %84 = arith.mulf %82, %83 : vector<4x32xf32>
    %85 = vector.extract_strided_slice %5 {offsets = [16, 0], sizes = [4, 128], strides = [1, 1]} : vector<32x128xf32> to vector<4x128xf32>
    %cst_17 = arith.constant dense<0.000000e+00> : vector<4x128xf32>
    %86 = tpu.matmul %84, %6, %cst_17 {dimension_numbers = #tpu.dot_dimension_numbers<[1], [0], [0], [1], [0, 0, 1, 1], [], []>} : vector<4x32xf32>, vector<32x128xf32>, vector<4x128xf32> -> vector<4x128xf32>
    %87 = arith.addf %85, %86 : vector<4x128xf32>
    %88 = vector.extract_strided_slice %87 {offsets = [0, 0], sizes = [4, 96], strides = [1, 1]} : vector<4x128xf32> to vector<4x96xf32>
    %89 = arith.negf %88 : vector<4x96xf32>
    %90 = math.exp %89 : vector<4x96xf32>
    %cst_18 = arith.constant 1.000000e+00 : f32
    %91 = vector.broadcast %cst_18 : f32 to vector<4x96xf32>
    %92 = arith.addf %91, %90 : vector<4x96xf32>
    %93 = arith.divf %91, %92 : vector<4x96xf32>
    %94 = vector.extract_strided_slice %87 {offsets = [0, 96], sizes = [4, 32], strides = [1, 1]} : vector<4x128xf32> to vector<4x32xf32>
    %95 = math.tanh %94 : vector<4x32xf32>
    %96 = vector.extract_strided_slice %93 {offsets = [0, 32], sizes = [4, 32], strides = [1, 1]} : vector<4x96xf32> to vector<4x32xf32>
    %97 = arith.mulf %96, %81 : vector<4x32xf32>
    %98 = vector.extract_strided_slice %93 {offsets = [0, 0], sizes = [4, 32], strides = [1, 1]} : vector<4x96xf32> to vector<4x32xf32>
    %99 = arith.mulf %98, %95 : vector<4x32xf32>
    %100 = arith.addf %97, %99 : vector<4x32xf32>
    %101 = vector.extract_strided_slice %93 {offsets = [0, 64], sizes = [4, 32], strides = [1, 1]} : vector<4x96xf32> to vector<4x32xf32>
    %102 = math.tanh %100 : vector<4x32xf32>
    %103 = arith.mulf %101, %102 : vector<4x32xf32>
    %104 = vector.extract_strided_slice %5 {offsets = [20, 0], sizes = [4, 128], strides = [1, 1]} : vector<32x128xf32> to vector<4x128xf32>
    %cst_19 = arith.constant dense<0.000000e+00> : vector<4x128xf32>
    %105 = tpu.matmul %103, %6, %cst_19 {dimension_numbers = #tpu.dot_dimension_numbers<[1], [0], [0], [1], [0, 0, 1, 1], [], []>} : vector<4x32xf32>, vector<32x128xf32>, vector<4x128xf32> -> vector<4x128xf32>
    %106 = arith.addf %104, %105 : vector<4x128xf32>
    %107 = vector.extract_strided_slice %106 {offsets = [0, 0], sizes = [4, 96], strides = [1, 1]} : vector<4x128xf32> to vector<4x96xf32>
    %108 = arith.negf %107 : vector<4x96xf32>
    %109 = math.exp %108 : vector<4x96xf32>
    %cst_20 = arith.constant 1.000000e+00 : f32
    %110 = vector.broadcast %cst_20 : f32 to vector<4x96xf32>
    %111 = arith.addf %110, %109 : vector<4x96xf32>
    %112 = arith.divf %110, %111 : vector<4x96xf32>
    %113 = vector.extract_strided_slice %106 {offsets = [0, 96], sizes = [4, 32], strides = [1, 1]} : vector<4x128xf32> to vector<4x32xf32>
    %114 = math.tanh %113 : vector<4x32xf32>
    %115 = vector.extract_strided_slice %112 {offsets = [0, 32], sizes = [4, 32], strides = [1, 1]} : vector<4x96xf32> to vector<4x32xf32>
    %116 = arith.mulf %115, %100 : vector<4x32xf32>
    %117 = vector.extract_strided_slice %112 {offsets = [0, 0], sizes = [4, 32], strides = [1, 1]} : vector<4x96xf32> to vector<4x32xf32>
    %118 = arith.mulf %117, %114 : vector<4x32xf32>
    %119 = arith.addf %116, %118 : vector<4x32xf32>
    %120 = vector.extract_strided_slice %112 {offsets = [0, 64], sizes = [4, 32], strides = [1, 1]} : vector<4x96xf32> to vector<4x32xf32>
    %121 = math.tanh %119 : vector<4x32xf32>
    %122 = arith.mulf %120, %121 : vector<4x32xf32>
    %123 = vector.extract_strided_slice %5 {offsets = [24, 0], sizes = [4, 128], strides = [1, 1]} : vector<32x128xf32> to vector<4x128xf32>
    %cst_21 = arith.constant dense<0.000000e+00> : vector<4x128xf32>
    %124 = tpu.matmul %122, %6, %cst_21 {dimension_numbers = #tpu.dot_dimension_numbers<[1], [0], [0], [1], [0, 0, 1, 1], [], []>} : vector<4x32xf32>, vector<32x128xf32>, vector<4x128xf32> -> vector<4x128xf32>
    %125 = arith.addf %123, %124 : vector<4x128xf32>
    %126 = vector.extract_strided_slice %125 {offsets = [0, 0], sizes = [4, 96], strides = [1, 1]} : vector<4x128xf32> to vector<4x96xf32>
    %127 = arith.negf %126 : vector<4x96xf32>
    %128 = math.exp %127 : vector<4x96xf32>
    %cst_22 = arith.constant 1.000000e+00 : f32
    %129 = vector.broadcast %cst_22 : f32 to vector<4x96xf32>
    %130 = arith.addf %129, %128 : vector<4x96xf32>
    %131 = arith.divf %129, %130 : vector<4x96xf32>
    %132 = vector.extract_strided_slice %125 {offsets = [0, 96], sizes = [4, 32], strides = [1, 1]} : vector<4x128xf32> to vector<4x32xf32>
    %133 = math.tanh %132 : vector<4x32xf32>
    %134 = vector.extract_strided_slice %131 {offsets = [0, 32], sizes = [4, 32], strides = [1, 1]} : vector<4x96xf32> to vector<4x32xf32>
    %135 = arith.mulf %134, %119 : vector<4x32xf32>
    %136 = vector.extract_strided_slice %131 {offsets = [0, 0], sizes = [4, 32], strides = [1, 1]} : vector<4x96xf32> to vector<4x32xf32>
    %137 = arith.mulf %136, %133 : vector<4x32xf32>
    %138 = arith.addf %135, %137 : vector<4x32xf32>
    %139 = vector.extract_strided_slice %131 {offsets = [0, 64], sizes = [4, 32], strides = [1, 1]} : vector<4x96xf32> to vector<4x32xf32>
    %140 = math.tanh %138 : vector<4x32xf32>
    %141 = arith.mulf %139, %140 : vector<4x32xf32>
    %142 = vector.extract_strided_slice %5 {offsets = [28, 0], sizes = [4, 128], strides = [1, 1]} : vector<32x128xf32> to vector<4x128xf32>
    %cst_23 = arith.constant dense<0.000000e+00> : vector<4x128xf32>
    %143 = tpu.matmul %141, %6, %cst_23 {dimension_numbers = #tpu.dot_dimension_numbers<[1], [0], [0], [1], [0, 0, 1, 1], [], []>} : vector<4x32xf32>, vector<32x128xf32>, vector<4x128xf32> -> vector<4x128xf32>
    %144 = arith.addf %142, %143 : vector<4x128xf32>
    %145 = vector.extract_strided_slice %144 {offsets = [0, 0], sizes = [4, 96], strides = [1, 1]} : vector<4x128xf32> to vector<4x96xf32>
    %146 = arith.negf %145 : vector<4x96xf32>
    %147 = math.exp %146 : vector<4x96xf32>
    %cst_24 = arith.constant 1.000000e+00 : f32
    %148 = vector.broadcast %cst_24 : f32 to vector<4x96xf32>
    %149 = arith.addf %148, %147 : vector<4x96xf32>
    %150 = arith.divf %148, %149 : vector<4x96xf32>
    %151 = vector.extract_strided_slice %144 {offsets = [0, 96], sizes = [4, 32], strides = [1, 1]} : vector<4x128xf32> to vector<4x32xf32>
    %152 = math.tanh %151 : vector<4x32xf32>
    %153 = vector.extract_strided_slice %150 {offsets = [0, 32], sizes = [4, 32], strides = [1, 1]} : vector<4x96xf32> to vector<4x32xf32>
    %154 = arith.mulf %153, %138 : vector<4x32xf32>
    %155 = vector.extract_strided_slice %150 {offsets = [0, 0], sizes = [4, 32], strides = [1, 1]} : vector<4x96xf32> to vector<4x32xf32>
    %156 = arith.mulf %155, %152 : vector<4x32xf32>
    %157 = arith.addf %154, %156 : vector<4x32xf32>
    %158 = vector.extract_strided_slice %150 {offsets = [0, 64], sizes = [4, 32], strides = [1, 1]} : vector<4x96xf32> to vector<4x32xf32>
    %159 = math.tanh %157 : vector<4x32xf32>
    %160 = arith.mulf %158, %159 : vector<4x32xf32>
    %cst_25 = arith.constant 0.000000e+00 : f32
    %161 = vector.broadcast %cst_25 : f32 to vector<4x32xf32>
    %162 = arith.maximumf %160, %161 : vector<4x32xf32>
    %c0_26 = arith.constant 0 : index
    %c0_27 = arith.constant 0 : index
    %163 = vector.load %arg4[%c0_26, %c0_27] : memref<32x256xf32, #tpu.memory_space<vmem>>, vector<32x256xf32>
    %cst_28 = arith.constant dense<0.000000e+00> : vector<4x256xf32>
    %164 = tpu.matmul %162, %163, %cst_28 {dimension_numbers = #tpu.dot_dimension_numbers<[1], [0], [0], [1], [0, 0, 1, 1], [], []>} : vector<4x32xf32>, vector<32x256xf32>, vector<4x256xf32> -> vector<4x256xf32>
    %c0_29 = arith.constant 0 : index
    %c0_30 = arith.constant 0 : index
    %165 = vector.load %arg5[%c0_29, %c0_30] : memref<1x256xf32, #tpu.memory_space<vmem>>, vector<1x256xf32>
    %166 = vector.broadcast %165 : vector<1x256xf32> to vector<4x256xf32>
    %167 = arith.addf %164, %166 : vector<4x256xf32>
    %c0_31 = arith.constant 0 : index
    %c0_32 = arith.constant 0 : index
    %168 = vector.load %arg6[%c0_31, %c0_32] : memref<256x256xf32, #tpu.memory_space<vmem>>, vector<256x256xf32>
    %cst_33 = arith.constant dense<0.000000e+00> : vector<4x256xf32>
    %169 = tpu.matmul %167, %168, %cst_33 {dimension_numbers = #tpu.dot_dimension_numbers<[1], [0], [0], [1], [0, 0, 1, 1], [], []>} : vector<4x256xf32>, vector<256x256xf32>, vector<4x256xf32> -> vector<4x256xf32>
    %c0_34 = arith.constant 0 : index
    %c0_35 = arith.constant 0 : index
    %170 = vector.load %arg7[%c0_34, %c0_35] : memref<1x256xf32, #tpu.memory_space<vmem>>, vector<1x256xf32>
    %171 = vector.broadcast %170 : vector<1x256xf32> to vector<4x256xf32>
    %172 = arith.addf %169, %171 : vector<4x256xf32>
    %c0_36 = arith.constant 0 : index
    %c0_37 = arith.constant 0 : index
    %173 = vector.load %arg8[%c0_36, %c0_37] : memref<256x128xf32, #tpu.memory_space<vmem>>, vector<256x128xf32>
    %cst_38 = arith.constant dense<0.000000e+00> : vector<4x128xf32>
    %174 = tpu.matmul %172, %173, %cst_38 {dimension_numbers = #tpu.dot_dimension_numbers<[1], [0], [0], [1], [0, 0, 1, 1], [], []>} : vector<4x256xf32>, vector<256x128xf32>, vector<4x128xf32> -> vector<4x128xf32>
    %c0_39 = arith.constant 0 : index
    %c0_40 = arith.constant 0 : index
    %175 = vector.load %arg9[%c0_39, %c0_40] : memref<1x128xf32, #tpu.memory_space<vmem>>, vector<1x128xf32>
    %176 = vector.broadcast %175 : vector<1x128xf32> to vector<4x128xf32>
    %177 = arith.addf %174, %176 : vector<4x128xf32>
    %cst_41 = arith.constant 0.000000e+00 : f32
    %178 = vector.broadcast %cst_41 : f32 to vector<4x128xf32>
    %179 = arith.maximumf %177, %178 : vector<4x128xf32>
    %c0_42 = arith.constant 0 : index
    %c0_43 = arith.constant 0 : index
    %180 = vector.load %arg10[%c0_42, %c0_43] : memref<128x4xf32, #tpu.memory_space<vmem>>, vector<128x4xf32>
    %cst_44 = arith.constant dense<0.000000e+00> : vector<4x4xf32>
    %181 = tpu.matmul %179, %180, %cst_44 {dimension_numbers = #tpu.dot_dimension_numbers<[1], [0], [0], [1], [0, 0, 1, 1], [], []>} : vector<4x128xf32>, vector<128x4xf32>, vector<4x4xf32> -> vector<4x4xf32>
    %c0_45 = arith.constant 0 : index
    %c0_46 = arith.constant 0 : index
    %182 = vector.load %arg11[%c0_45, %c0_46] : memref<1x4xf32, #tpu.memory_space<vmem>>, vector<1x4xf32>
    %183 = vector.broadcast %182 : vector<1x4xf32> to vector<4x4xf32>
    %184 = arith.addf %181, %183 : vector<4x4xf32>
    %c0_47 = arith.constant 0 : index
    %c0_48 = arith.constant 0 : index
    %185 = vector.load %arg12[%c0_47, %c0_48] : memref<4x4xf32, #tpu.memory_space<vmem>>, vector<4x4xf32>
    tpu.vector_store %arg12[%c0_47, %c0_48], %184 {strides = array<i32>} : memref<4x4xf32, #tpu.memory_space<vmem>>, vector<4x4xf32>,
    return
  }
}

</mosaic_0001>

<llo_original>
// kernel: lstm_module_forward.1
$region0: #{lstm_module_forward.1}
  #allocation0 [shape = 'u32[]', space=smem, size = 0x4, offset = 0x4, fixed_abs, tag = 'smem constant byte address 0x4 - core index']
  #allocation1 [shape = 'u32[144,128]{1,0:T(1,128)}', space=vmem, size = 0x12000, scoped, tag = 'internal scratch']
  %s0 = inlined_call_operand.vmem [shape: f32[32,12], index: 0, kind: input, shape index: {}]
  %s1 = inlined_call_operand.vmem [shape: f32[12,128], index: 1, kind: input, shape index: {}]
  %s2 = inlined_call_operand.vmem [shape: f32[32,128], index: 2, kind: input, shape index: {}]
  %s3 = inlined_call_operand.vmem [shape: f32[1,128], index: 3, kind: input, shape index: {}]
  %s4 = inlined_call_operand.vmem [shape: f32[32,256], index: 4, kind: input, shape index: {}]
  %s5 = inlined_call_operand.vmem [shape: f32[1,256], index: 5, kind: input, shape index: {}]
  %s6 = inlined_call_operand.hbm [shape: f32[256,256], index: 6, kind: input, shape index: {}]
  %s7 = inlined_call_operand.vmem [shape: f32[1,256], index: 7, kind: input, shape index: {}]
  %s8 = inlined_call_operand.hbm [shape: f32[256,128], index: 8, kind: input, shape index: {}]
  %s9 = inlined_call_operand.vmem [shape: f32[1,128], index: 9, kind: input, shape index: {}]
  %s10 = inlined_call_operand.vmem [shape: f32[128,4], index: 10, kind: input, shape index: {}]
  %s11 = inlined_call_operand.vmem [shape: f32[1,4], index: 11, kind: input, shape index: {}]
  %s12 = inlined_call_operand.hbm [shape: f32[4,4], index: 12, kind: output, shape index: {}]
  %s13 = sld [smem:[#allocation0]]
  $region66: #{lstm_module_forward.1} parent=0
    _
  %s15 = ssub.s32 1, %s13
  %s16 = scalar_select 0, %s15, %s13
  $region1: #{lstm_module_forward.1} parent=0
    #allocation2 [shape = 'u8[262144]{0}', space=vmem, size = 0x40000, scoped, tag = 'input window, operand 6, single buffered']
    #allocation3 [shape = 's32[1]{0}', space=sflag, size = 0x4, scoped, tag = 'scoped memory for lstm_module_forward.1']
    #allocation4 [shape = 's32[1]{0}', space=sflag, size = 0x4, scoped, tag = 'scoped memory for lstm_module_forward.1']
    #allocation5 [shape = 'u8[131072]{0}', space=vmem, size = 0x20000, scoped, tag = 'input window, operand 8, single buffered']
    #allocation6 [shape = 's32[1]{0}', space=sflag, size = 0x4, scoped, tag = 'scoped memory for lstm_module_forward.1']
    #allocation7 [shape = 'u8[2048]{0}', space=vmem, size = 0x800, scoped, tag = 'output window, operand 0, single buffered']
    %17 = vsyncpa [#allocation3], 0
    %18 = vsyncpa [#allocation6], 0
    %19 = vsyncpa [#allocation4], 0
    // Predicated region
    $region2: #{lstm_module_forward.1} parent=1 // pred_check
      _
    $region3: #{lstm_module_forward.1} parent=1 // pred_check_branch
      %21 = sbr.rel (0) target = $region5
    $region4: #{lstm_module_forward.1} parent=1 // pred_region
      _
    $region5: #{lstm_module_forward.1} parent=1 // pred_fallthru
      _
    // Predicated region
    $region6: #{lstm_module_forward.1} parent=1 // pred_check
      _
    $region7: #{lstm_module_forward.1} parent=1 // pred_check_branch
      %23 = sbr.rel (0) target = $region9
    $region8: #{lstm_module_forward.1} parent=1 // pred_region
      _
    $region9: #{lstm_module_forward.1} parent=1 // pred_fallthru
      _
    // Predicated region
    $region10: #{lstm_module_forward.1} parent=1 // pred_check
      _
    $region11: #{lstm_module_forward.1} parent=1 // pred_check_branch
      %25 = sbr.rel (0) target = $region13
    $region12: #{lstm_module_forward.1} parent=1 // pred_region
      _
    $region13: #{lstm_module_forward.1} parent=1 // pred_fallthru
      _
    // Predicated region
    $region14: #{lstm_module_forward.1} parent=1 // pred_check
      _
    $region15: #{lstm_module_forward.1} parent=1 // pred_check_branch
      %27 = sbr.rel (0) target = $region17
    $region16: #{lstm_module_forward.1} parent=1 // pred_region
      _
    $region17: #{lstm_module_forward.1} parent=1 // pred_fallthru
      _
    // Predicated region
    $region18: #{lstm_module_forward.1} parent=1 // pred_check
      _
    $region19: #{lstm_module_forward.1} parent=1 // pred_check_branch
      %29 = sbr.rel (0) target = $region21
    $region20: #{lstm_module_forward.1} parent=1 // pred_region
      _
    $region21: #{lstm_module_forward.1} parent=1 // pred_fallthru
      _
    // Predicated region
    $region22: #{lstm_module_forward.1} parent=1 // pred_check
      _
    $region23: #{lstm_module_forward.1} parent=1 // pred_check_branch
      %31 = sbr.rel (0) target = $region25
    $region24: #{lstm_module_forward.1} parent=1 // pred_region
      _
    $region25: #{lstm_module_forward.1} parent=1 // pred_fallthru
      _
    // Predicated region
    $region26: #{lstm_module_forward.1} parent=1 // pred_check
      _
    $region27: #{lstm_module_forward.1} parent=1 // pred_check_branch
      %33 = sbr.rel (0) target = $region29
    $region28: #{lstm_module_forward.1} parent=1 // pred_region
      %s35 = ssub.s32 8192, 8192
      %36 = vsyncadd [#allocation3], %s35
      %s37 = sshll.u32 [#allocation2], 4
      %s38 = int_to_ptr.vmem [resolvable:$true] %s37
      %43 = dma.hbm_to_vmem [thread:$0]  %s6, 8192, %s38, [#allocation3], 256, 256, 16
    $region29: #{lstm_module_forward.1} parent=1 // pred_fallthru
      _
    // Predicated region
    $region30: #{lstm_module_forward.1} parent=1 // pred_check
      _
    $region31: #{lstm_module_forward.1} parent=1 // pred_check_branch
      %45 = sbr.rel (0) target = $region33
    $region32: #{lstm_module_forward.1} parent=1 // pred_region
      _
    $region33: #{lstm_module_forward.1} parent=1 // pred_fallthru
      _
    // Predicated region
    $region34: #{lstm_module_forward.1} parent=1 // pred_check
      _
    $region35: #{lstm_module_forward.1} parent=1 // pred_check_branch
      %47 = sbr.rel (0) target = $region37
    $region36: #{lstm_module_forward.1} parent=1 // pred_region
      %s49 = ssub.s32 4096, 4096
      %50 = vsyncadd [#allocation6], %s49
      %s51 = sshll.u32 [#allocation5], 4
      %s52 = int_to_ptr.vmem [resolvable:$true] %s51
      %57 = dma.hbm_to_vmem [thread:$0]  %s8, 4096, %s52, [#allocation6], 128, 128, 8
    $region37: #{lstm_module_forward.1} parent=1 // pred_fallthru
      _
    // Predicated region
    $region38: #{lstm_module_forward.1} parent=1 // pred_check
      _
    $region39: #{lstm_module_forward.1} parent=1 // pred_check_branch
      %59 = sbr.rel (0) target = $region41
    $region40: #{lstm_module_forward.1} parent=1 // pred_region
      _
    $region41: #{lstm_module_forward.1} parent=1 // pred_fallthru
      _
    // Predicated region
    $region42: #{lstm_module_forward.1} parent=1 // pred_check
      _
    $region43: #{lstm_module_forward.1} parent=1 // pred_check_branch
      %61 = sbr.rel (0) target = $region45
    $region44: #{lstm_module_forward.1} parent=1 // pred_region
      _
    $region45: #{lstm_module_forward.1} parent=1 // pred_fallthru
      _
    // Predicated region
    $region46: #{lstm_module_forward.1} parent=1 // pred_check
      _
    $region47: #{lstm_module_forward.1} parent=1 // pred_check_branch
      %63 = sbr.rel (0) target = $region49
    $region48: #{lstm_module_forward.1} parent=1 // pred_region
      _
    $region49: #{lstm_module_forward.1} parent=1 // pred_fallthru
      _
    // Predicated region
    $region50: #{lstm_module_forward.1} parent=1 // pred_check
      _
    $region51: #{lstm_module_forward.1} parent=1 // pred_check_branch
      %65 = sbr.rel (0) target = $region53
    $region52: #{lstm_module_forward.1} parent=1 // pred_region
      %66 = dma.done [#allocation3], 8192
    $region53: #{lstm_module_forward.1} parent=1 // pred_fallthru
      _
    // Predicated region
    $region54: #{lstm_module_forward.1} parent=1 // pred_check
      _
    $region55: #{lstm_module_forward.1} parent=1 // pred_check_branch
      %68 = sbr.rel (0) target = $region57
    $region56: #{lstm_module_forward.1} parent=1 // pred_region
      %69 = dma.done [#allocation6], 4096
    $region57: #{lstm_module_forward.1} parent=1 // pred_fallthru
      _
    %v70 = vld [vmem:[%s0] sm:$0xff]
    %v71 = vld [vmem:[%s0 + $0x8] sm:$0xff]
    %v72 = vld [vmem:[%s0 + $0x10] sm:$0xff]
    %v73 = vld [vmem:[%s0 + $0x18] sm:$0xff]
    %v74 = vld [vmem:[%s1] sm:$0xff]
    %v75 = vld [vmem:[%s1 + $0x8] sm:$0xf]
    %v76 = vld [vmem:[%s3] sm:$0x1]
    %v78 = vlaneseq
    %v79 = vshrl.u32 %v78, 7
    %v80 = vsub.s32 0, %v79
    %v81 = vrot.slane %v76, %v80
    %vm83 = vcmask 97280
    %v85 = vsel %vm83, %v70, 0
    %v88 = vsel %vm83, %v71, 0
    %v91 = vsel %vm83, %v72, 0
    %v94 = vsel %vm83, %v73, 0
    %vm96 = vcmask 1043456
    %v98 = vsel %vm96, %v75, 0
    %100 = vmatprep.subr.mxu0 0.0
    %101 = vmatpush1.msra.mxu0 %v74
    %102 = vmatprep.subr.mxu0 0.0
    %103 = vmatpush1.msra.mxu0 %v98
    %104 = vmatprep.subr.mxu0 0.0
    %105 = vmatpush1.msra.mxu0 0.0
    %106 = vmatprep.subr.mxu0 0.0
    %107 = vmatpush1.msra.mxu0 0.0
    %108 = vmatprep.subr.mxu0 0.0
    %109 = vmatpush1.msra.mxu0 0.0
    %110 = vmatprep.subr.mxu0 0.0
    %111 = vmatpush1.msra.mxu0 0.0
    %112 = vmatprep.subr.mxu0 0.0
    %113 = vmatpush1.msra.mxu0 0.0
    %114 = vmatprep.subr.mxu0 0.0
    %115 = vmatpush1.msra.mxu0 0.0
    %116 = vmatprep.subr.mxu0 0.0
    %117 = vmatpush1.msra.mxu0 0.0
    %118 = vmatprep.subr.mxu0 0.0
    %119 = vmatpush1.msra.mxu0 0.0
    %120 = vmatprep.subr.mxu0 0.0
    %121 = vmatpush1.msra.mxu0 0.0
    %122 = vmatprep.subr.mxu0 0.0
    %123 = vmatpush1.msra.mxu0 0.0
    %124 = vmatprep.subr.mxu0 0.0
    %125 = vmatpush1.msra.mxu0 0.0
    %126 = vmatprep.subr.mxu0 0.0
    %127 = vmatpush1.msra.mxu0 0.0
    %128 = vmatprep.subr.mxu0 0.0
    %129 = vmatpush1.msra.mxu0 0.0
    %130 = vmatprep.subr.mxu0 0.0
    %131 = vmatpush1.msra.mxu0 0.0
    %132 = vmatprep.subr.mxu0 0.0
    %133 = vmatpush1.msra.mxu0 0.0
    %134 = vmatprep.subr.mxu0 0.0
    %135 = vmatpush1.msra.mxu0 0.0
    %136 = vmatprep.subr.mxu0 0.0
    %137 = vmatpush1.msra.mxu0 0.0
    %138 = vmatprep.subr.mxu0 0.0
    %139 = vmatpush1.msra.mxu0 0.0
    %140 = vmatprep.subr.mxu0 0.0
    %141 = vmatpush1.msra.mxu0 0.0
    %142 = vmatprep.subr.mxu0 0.0
    %143 = vmatpush1.msra.mxu0 0.0
    %144 = vmatprep.subr.mxu0 0.0
    %145 = vmatpush1.msra.mxu0 0.0
    %146 = vmatprep.subr.mxu0 0.0
    %147 = vmatpush1.msra.mxu0 0.0
    %148 = vmatprep.subr.mxu0 0.0
    %149 = vmatpush1.msra.mxu0 0.0
    %150 = vmatprep.subr.mxu0 0.0
    %151 = vmatpush1.msra.mxu0 0.0
    %152 = vmatprep.subr.mxu0 0.0
    %153 = vmatpush1.msra.mxu0 0.0
    %154 = vmatprep.subr.mxu0 0.0
    %155 = vmatpush1.msra.mxu0 0.0
    %156 = vmatprep.subr.mxu0 0.0
    %157 = vmatpush1.msra.mxu0 0.0
    %158 = vmatprep.subr.mxu0 0.0
    %159 = vmatpush1.msra.mxu0 0.0
    %160 = vmatprep.subr.mxu0 0.0
    %161 = vmatpush1.msra.mxu0 0.0
    %162 = vmatprep.subr.mxu0 0.0
    %163 = vmatpush1.msra.mxu0 0.0
    %164 = vmatprep.mubr.f32.mxu0 0.0
    %165 = vmatmul.mubr.f32.gmra.mrb[0].mxu0 %v85
    %v166 = vpop.f32.mrb[0].mxu0
    %v167 = vadd.f32 %v81, %v166
    %v168 = vpop.f32.mrb[0].mxu0
    %169 = vmatprep.mubr.f32.mxu0 0.0
    %170 = vmatmul.mubr.f32.gmra.mrb[0].mxu0 %v88
    %v171 = vpop.f32.mrb[0].mxu0
    %v172 = vadd.f32 %v81, %v171
    %v173 = vpop.f32.mrb[0].mxu0
    %174 = vmatprep.mubr.f32.mxu0 0.0
    %175 = vmatmul.mubr.f32.gmra.mrb[0].mxu0 %v91
    %v176 = vpop.f32.mrb[0].mxu0
    %v177 = vadd.f32 %v81, %v176
    %v178 = vpop.f32.mrb[0].mxu0
    %179 = vmatprep.mubr.f32.mxu0 0.0
    %180 = vmatmul.mubr.f32.gmra.mrb[0].mxu0 %v94
    %v181 = vpop.f32.mrb[0].mxu0
    %v182 = vadd.f32 %v81, %v181
    %v183 = vpop.f32.mrb[0].mxu0
    %184 = vdwg.mxu0
    %v185 = vld [vmem:[%s2] sm:$0xff]
    %v186 = vld [vmem:[%s2 + $0x8] sm:$0xff]
    %v187 = vld [vmem:[%s2 + $0x10] sm:$0xff]
    %v188 = vld [vmem:[%s2 + $0x18] sm:$0xff]
    %vm189 = vcmask 261120
    %v191 = vsel %vm189, 0.0, 0
    %193 = vmatprep.subr.mxu0 0.0
    %194 = vmatpush1.msra.mxu0 %v185
    %195 = vmatprep.subr.mxu0 0.0
    %196 = vmatpush1.msra.mxu0 %v186
    %197 = vmatprep.subr.mxu0 0.0
    %198 = vmatpush1.msra.mxu0 %v187
    %199 = vmatprep.subr.mxu0 0.0
    %200 = vmatpush1.msra.mxu0 %v188
    %201 = vmatprep.subr.mxu0 0.0
    %202 = vmatpush1.msra.mxu0 0.0
    %203 = vmatprep.subr.mxu0 0.0
    %204 = vmatpush1.msra.mxu0 0.0
    %205 = vmatprep.subr.mxu0 0.0
    %206 = vmatpush1.msra.mxu0 0.0
    %207 = vmatprep.subr.mxu0 0.0
    %208 = vmatpush1.msra.mxu0 0.0
    %209 = vmatprep.subr.mxu0 0.0
    %210 = vmatpush1.msra.mxu0 0.0
    %211 = vmatprep.subr.mxu0 0.0
    %212 = vmatpush1.msra.mxu0 0.0
    %213 = vmatprep.subr.mxu0 0.0
    %214 = vmatpush1.msra.mxu0 0.0
    %215 = vmatprep.subr.mxu0 0.0
    %216 = vmatpush1.msra.mxu0 0.0
    %217 = vmatprep.subr.mxu0 0.0
    %218 = vmatpush1.msra.mxu0 0.0
    %219 = vmatprep.subr.mxu0 0.0
    %220 = vmatpush1.msra.mxu0 0.0
    %221 = vmatprep.subr.mxu0 0.0
    %222 = vmatpush1.msra.mxu0 0.0
    %223 = vmatprep.subr.mxu0 0.0
    %224 = vmatpush1.msra.mxu0 0.0
    %225 = vmatprep.subr.mxu0 0.0
    %226 = vmatpush1.msra.mxu0 0.0
    %227 = vmatprep.subr.mxu0 0.0
    %228 = vmatpush1.msra.mxu0 0.0
    %229 = vmatprep.subr.mxu0 0.0
    %230 = vmatpush1.msra.mxu0 0.0
    %231 = vmatprep.subr.mxu0 0.0
    %232 = vmatpush1.msra.mxu0 0.0
    %233 = vmatprep.subr.mxu0 0.0
    %234 = vmatpush1.msra.mxu0 0.0
    %235 = vmatprep.subr.mxu0 0.0
    %236 = vmatpush1.msra.mxu0 0.0
    %237 = vmatprep.subr.mxu0 0.0
    %238 = vmatpush1.msra.mxu0 0.0
    %239 = vmatprep.subr.mxu0 0.0
    %240 = vmatpush1.msra.mxu0 0.0
    %241 = vmatprep.subr.mxu0 0.0
    %242 = vmatpush1.msra.mxu0 0.0
    %243 = vmatprep.subr.mxu0 0.0
    %244 = vmatpush1.msra.mxu0 0.0
    %245 = vmatprep.subr.mxu0 0.0
    %246 = vmatpush1.msra.mxu0 0.0
    %247 = vmatprep.subr.mxu0 0.0
    %248 = vmatpush1.msra.mxu0 0.0
    %249 = vmatprep.subr.mxu0 0.0
    %250 = vmatpush1.msra.mxu0 0.0
    %251 = vmatprep.subr.mxu0 0.0
    %252 = vmatpush1.msra.mxu0 0.0
    %253 = vmatprep.subr.mxu0 0.0
    %254 = vmatpush1.msra.mxu0 0.0
    %255 = vmatprep.subr.mxu0 0.0
    %256 = vmatpush1.msra.mxu0 0.0
    %257 = vmatprep.mubr.f32.mxu0 0.0
    %258 = vmatmul.mubr.f32.gmra.mrb[0].mxu0 %v191
    %v259 = vpop.f32.mrb[0].mxu0
    %v260 = vadd.f32 0.0, %v259
    %v261 = vpop.f32.mrb[0].mxu0
    %262 = vdwg.mxu0
    %v263 = vadd.f32 %v167, %v260
    %v264 = vxor.u32 %v263, 2147483648
    %v265 = vmul.f32 %v264, 1.442695
    %v266 = vpow.pop %v265
    %v267 = vadd.f32 %v266, 1.0
    %v268 = vrcp.pop %v267
    %v269 = vmul.f32 1.0, %v268
    %v270 = vtanh.pop %v263
    %v271 = vmul.f32 %v269, 0.0
    %273 = vrot.lane.b32.xlu0 %v270, 32
    %v274 = vpop.permute.xlu0 %273
    %v276 = vmul.f32 %v269, %v274
    %278 = vrot.lane.b32.xlu0 %v276, 32
    %v279 = vpop.permute.xlu0 %278
    %v281 = vadd.f32 %v271, %v279
    %v282 = vtanh.pop %v281
    %284 = vrot.lane.b32.xlu0 %v282, 32
    %v285 = vpop.permute.xlu0 %284
    %v287 = vmul.f32 %v269, %v285
    %289 = vrot.lane.b32.xlu0 %v287, 64
    %v290 = vpop.permute.xlu0 %289
    %v291 = vsel %vm189, %v290, 0
    %293 = vmatprep.subr.mxu0 0.0
    %294 = vmatpush1.msra.mxu0 %v185
    %295 = vmatprep.subr.mxu0 0.0
    %296 = vmatpush1.msra.mxu0 %v186
    %297 = vmatprep.subr.mxu0 0.0
    %298 = vmatpush1.msra.mxu0 %v187
    %299 = vmatprep.subr.mxu0 0.0
    %300 = vmatpush1.msra.mxu0 %v188
    %301 = vmatprep.subr.mxu0 0.0
    %302 = vmatpush1.msra.mxu0 0.0
    %303 = vmatprep.subr.mxu0 0.0
    %304 = vmatpush1.msra.mxu0 0.0
    %305 = vmatprep.subr.mxu0 0.0
    %306 = vmatpush1.msra.mxu0 0.0
    %307 = vmatprep.subr.mxu0 0.0
    %308 = vmatpush1.msra.mxu0 0.0
    %309 = vmatprep.subr.mxu0 0.0
    %310 = vmatpush1.msra.mxu0 0.0
    %311 = vmatprep.subr.mxu0 0.0
    %312 = vmatpush1.msra.mxu0 0.0
    %313 = vmatprep.subr.mxu0 0.0
    %314 = vmatpush1.msra.mxu0 0.0
    %315 = vmatprep.subr.mxu0 0.0
    %316 = vmatpush1.msra.mxu0 0.0
    %317 = vmatprep.subr.mxu0 0.0
    %318 = vmatpush1.msra.mxu0 0.0
    %319 = vmatprep.subr.mxu0 0.0
    %320 = vmatpush1.msra.mxu0 0.0
    %321 = vmatprep.subr.mxu0 0.0
    %322 = vmatpush1.msra.mxu0 0.0
    %323 = vmatprep.subr.mxu0 0.0
    %324 = vmatpush1.msra.mxu0 0.0
    %325 = vmatprep.subr.mxu0 0.0
    %326 = vmatpush1.msra.mxu0 0.0
    %327 = vmatprep.subr.mxu0 0.0
    %328 = vmatpush1.msra.mxu0 0.0
    %329 = vmatprep.subr.mxu0 0.0
    %330 = vmatpush1.msra.mxu0 0.0
    %331 = vmatprep.subr.mxu0 0.0
    %332 = vmatpush1.msra.mxu0 0.0
    %333 = vmatprep.subr.mxu0 0.0
    %334 = vmatpush1.msra.mxu0 0.0
    %335 = vmatprep.subr.mxu0 0.0
    %336 = vmatpush1.msra.mxu0 0.0
    %337 = vmatprep.subr.mxu0 0.0
    %338 = vmatpush1.msra.mxu0 0.0
    %339 = vmatprep.subr.mxu0 0.0
    %340 = vmatpush1.msra.mxu0 0.0
    %341 = vmatprep.subr.mxu0 0.0
    %342 = vmatpush1.msra.mxu0 0.0
    %343 = vmatprep.subr.mxu0 0.0
    %344 = vmatpush1.msra.mxu0 0.0
    %345 = vmatprep.subr.mxu0 0.0
    %346 = vmatpush1.msra.mxu0 0.0
    %347 = vmatprep.subr.mxu0 0.0
    %348 = vmatpush1.msra.mxu0 0.0
    %349 = vmatprep.subr.mxu0 0.0
    %350 = vmatpush1.msra.mxu0 0.0
    %351 = vmatprep.subr.mxu0 0.0
    %352 = vmatpush1.msra.mxu0 0.0
    %353 = vmatprep.subr.mxu0 0.0
    %354 = vmatpush1.msra.mxu0 0.0
    %355 = vmatprep.subr.mxu0 0.0
    %356 = vmatpush1.msra.mxu0 0.0
    %357 = vmatprep.mubr.f32.mxu0 0.0
    %358 = vmatmul.mubr.f32.gmra.mrb[0].mxu0 %v291
    %v359 = vpop.f32.mrb[0].mxu0
    %v360 = vadd.f32 0.0, %v359
    %v361 = vpop.f32.mrb[0].mxu0
    %362 = vdwg.mxu0
    %v364 = vrot.slane %v360, 4
    %v366 = vadd.f32 %v167, %v364
    %v367 = vxor.u32 %v366, 2147483648
    %v368 = vmul.f32 %v367, 1.442695
    %v369 = vpow.pop %v368
    %v370 = vadd.f32 %v369, 1.0
    %v371 = vrcp.pop %v370
    %v372 = vmul.f32 1.0, %v371
    %v373 = vtanh.pop %v366
    %v375 = vrot.slane %v281, 4
    %v377 = vmul.f32 %v372, %v375
    %379 = vrot.lane.b32.xlu0 %v373, 32
    %v380 = vpop.permute.xlu0 %379
    %v382 = vmul.f32 %v372, %v380
    %384 = vrot.lane.b32.xlu0 %v382, 32
    %v385 = vpop.permute.xlu0 %384
    %v387 = vadd.f32 %v377, %v385
    %v388 = vtanh.pop %v387
    %390 = vrot.lane.b32.xlu0 %v388, 32
    %v391 = vpop.permute.xlu0 %390
    %v393 = vmul.f32 %v372, %v391
    %v395 = vrot.slane %v393, 4
    %396 = vrot.lane.b32.xlu0 %v395, 64
    %v397 = vpop.permute.xlu0 %396
    %v398 = vsel %vm189, %v397, 0
    %400 = vmatprep.subr.mxu0 0.0
    %401 = vmatpush1.msra.mxu0 %v185
    %402 = vmatprep.subr.mxu0 0.0
    %403 = vmatpush1.msra.mxu0 %v186
    %404 = vmatprep.subr.mxu0 0.0
    %405 = vmatpush1.msra.mxu0 %v187
    %406 = vmatprep.subr.mxu0 0.0
    %407 = vmatpush1.msra.mxu0 %v188
    %408 = vmatprep.subr.mxu0 0.0
    %409 = vmatpush1.msra.mxu0 0.0
    %410 = vmatprep.subr.mxu0 0.0
    %411 = vmatpush1.msra.mxu0 0.0
    %412 = vmatprep.subr.mxu0 0.0
    %413 = vmatpush1.msra.mxu0 0.0
    %414 = vmatprep.subr.mxu0 0.0
    %415 = vmatpush1.msra.mxu0 0.0
    %416 = vmatprep.subr.mxu0 0.0
    %417 = vmatpush1.msra.mxu0 0.0
    %418 = vmatprep.subr.mxu0 0.0
    %419 = vmatpush1.msra.mxu0 0.0
    %420 = vmatprep.subr.mxu0 0.0
    %421 = vmatpush1.msra.mxu0 0.0
    %422 = vmatprep.subr.mxu0 0.0
    %423 = vmatpush1.msra.mxu0 0.0
    %424 = vmatprep.subr.mxu0 0.0
    %425 = vmatpush1.msra.mxu0 0.0
    %426 = vmatprep.subr.mxu0 0.0
    %427 = vmatpush1.msra.mxu0 0.0
    %428 = vmatprep.subr.mxu0 0.0
    %429 = vmatpush1.msra.mxu0 0.0
    %430 = vmatprep.subr.mxu0 0.0
    %431 = vmatpush1.msra.mxu0 0.0
    %432 = vmatprep.subr.mxu0 0.0
    %433 = vmatpush1.msra.mxu0 0.0
    %434 = vmatprep.subr.mxu0 0.0
    %435 = vmatpush1.msra.mxu0 0.0
    %436 = vmatprep.subr.mxu0 0.0
    %437 = vmatpush1.msra.mxu0 0.0
    %438 = vmatprep.subr.mxu0 0.0
    %439 = vmatpush1.msra.mxu0 0.0
    %440 = vmatprep.subr.mxu0 0.0
    %441 = vmatpush1.msra.mxu0 0.0
    %442 = vmatprep.subr.mxu0 0.0
    %443 = vmatpush1.msra.mxu0 0.0
    %444 = vmatprep.subr.mxu0 0.0
    %445 = vmatpush1.msra.mxu0 0.0
    %446 = vmatprep.subr.mxu0 0.0
    %447 = vmatpush1.msra.mxu0 0.0
    %448 = vmatprep.subr.mxu0 0.0
    %449 = vmatpush1.msra.mxu0 0.0
    %450 = vmatprep.subr.mxu0 0.0
    %451 = vmatpush1.msra.mxu0 0.0
    %452 = vmatprep.subr.mxu0 0.0
    %453 = vmatpush1.msra.mxu0 0.0
    %454 = vmatprep.subr.mxu0 0.0
    %455 = vmatpush1.msra.mxu0 0.0
    %456 = vmatprep.subr.mxu0 0.0
    %457 = vmatpush1.msra.mxu0 0.0
    %458 = vmatprep.subr.mxu0 0.0
    %459 = vmatpush1.msra.mxu0 0.0
    %460 = vmatprep.subr.mxu0 0.0
    %461 = vmatpush1.msra.mxu0 0.0
    %462 = vmatprep.subr.mxu0 0.0
    %463 = vmatpush1.msra.mxu0 0.0
    %464 = vmatprep.mubr.f32.mxu0 0.0
    %465 = vmatmul.mubr.f32.gmra.mrb[0].mxu0 %v398
    %v466 = vpop.f32.mrb[0].mxu0
    %v467 = vadd.f32 0.0, %v466
    %v468 = vpop.f32.mrb[0].mxu0
    %469 = vdwg.mxu0
    %v470 = vadd.f32 %v172, %v467
    %v471 = vxor.u32 %v470, 2147483648
    %v472 = vmul.f32 %v471, 1.442695
    %v473 = vpow.pop %v472
    %v474 = vadd.f32 %v473, 1.0
    %v475 = vrcp.pop %v474
    %v476 = vmul.f32 1.0, %v475
    %v477 = vtanh.pop %v470
    %v479 = vrot.slane %v387, 4
    %v481 = vmul.f32 %v476, %v479
    %483 = vrot.lane.b32.xlu0 %v477, 32
    %v484 = vpop.permute.xlu0 %483
    %v486 = vmul.f32 %v476, %v484
    %488 = vrot.lane.b32.xlu0 %v486, 32
    %v489 = vpop.permute.xlu0 %488
    %v491 = vadd.f32 %v481, %v489
    %v492 = vtanh.pop %v491
    %494 = vrot.lane.b32.xlu0 %v492, 32
    %v495 = vpop.permute.xlu0 %494
    %v497 = vmul.f32 %v476, %v495
    %499 = vrot.lane.b32.xlu0 %v497, 64
    %v500 = vpop.permute.xlu0 %499
    %v501 = vsel %vm189, %v500, 0
    %503 = vmatprep.subr.mxu0 0.0
    %504 = vmatpush1.msra.mxu0 %v185
    %505 = vmatprep.subr.mxu0 0.0
    %506 = vmatpush1.msra.mxu0 %v186
    %507 = vmatprep.subr.mxu0 0.0
    %508 = vmatpush1.msra.mxu0 %v187
    %509 = vmatprep.subr.mxu0 0.0
    %510 = vmatpush1.msra.mxu0 %v188
    %511 = vmatprep.subr.mxu0 0.0
    %512 = vmatpush1.msra.mxu0 0.0
    %513 = vmatprep.subr.mxu0 0.0
    %514 = vmatpush1.msra.mxu0 0.0
    %515 = vmatprep.subr.mxu0 0.0
    %516 = vmatpush1.msra.mxu0 0.0
    %517 = vmatprep.subr.mxu0 0.0
    %518 = vmatpush1.msra.mxu0 0.0
    %519 = vmatprep.subr.mxu0 0.0
    %520 = vmatpush1.msra.mxu0 0.0
    %521 = vmatprep.subr.mxu0 0.0
    %522 = vmatpush1.msra.mxu0 0.0
    %523 = vmatprep.subr.mxu0 0.0
    %524 = vmatpush1.msra.mxu0 0.0
    %525 = vmatprep.subr.mxu0 0.0
    %526 = vmatpush1.msra.mxu0 0.0
    %527 = vmatprep.subr.mxu0 0.0
    %528 = vmatpush1.msra.mxu0 0.0
    %529 = vmatprep.subr.mxu0 0.0
    %530 = vmatpush1.msra.mxu0 0.0
    %531 = vmatprep.subr.mxu0 0.0
    %532 = vmatpush1.msra.mxu0 0.0
    %533 = vmatprep.subr.mxu0 0.0
    %534 = vmatpush1.msra.mxu0 0.0
    %535 = vmatprep.subr.mxu0 0.0
    %536 = vmatpush1.msra.mxu0 0.0
    %537 = vmatprep.subr.mxu0 0.0
    %538 = vmatpush1.msra.mxu0 0.0
    %539 = vmatprep.subr.mxu0 0.0
    %540 = vmatpush1.msra.mxu0 0.0
    %541 = vmatprep.subr.mxu0 0.0
    %542 = vmatpush1.msra.mxu0 0.0
    %543 = vmatprep.subr.mxu0 0.0
    %544 = vmatpush1.msra.mxu0 0.0
    %545 = vmatprep.subr.mxu0 0.0
    %546 = vmatpush1.msra.mxu0 0.0
    %547 = vmatprep.subr.mxu0 0.0
    %548 = vmatpush1.msra.mxu0 0.0
    %549 = vmatprep.subr.mxu0 0.0
    %550 = vmatpush1.msra.mxu0 0.0
    %551 = vmatprep.subr.mxu0 0.0
    %552 = vmatpush1.msra.mxu0 0.0
    %553 = vmatprep.subr.mxu0 0.0
    %554 = vmatpush1.msra.mxu0 0.0
    %555 = vmatprep.subr.mxu0 0.0
    %556 = vmatpush1.msra.mxu0 0.0
    %557 = vmatprep.subr.mxu0 0.0
    %558 = vmatpush1.msra.mxu0 0.0
    %559 = vmatprep.subr.mxu0 0.0
    %560 = vmatpush1.msra.mxu0 0.0
    %561 = vmatprep.subr.mxu0 0.0
    %562 = vmatpush1.msra.mxu0 0.0
    %563 = vmatprep.subr.mxu0 0.0
    %564 = vmatpush1.msra.mxu0 0.0
    %565 = vmatprep.subr.mxu0 0.0
    %566 = vmatpush1.msra.mxu0 0.0
    %567 = vmatprep.mubr.f32.mxu0 0.0
    %568 = vmatmul.mubr.f32.gmra.mrb[0].mxu0 %v501
    %v569 = vpop.f32.mrb[0].mxu0
    %v570 = vadd.f32 0.0, %v569
    %v571 = vpop.f32.mrb[0].mxu0
    %572 = vdwg.mxu0
    %v574 = vrot.slane %v570, 4
    %v576 = vadd.f32 %v172, %v574
    %v577 = vxor.u32 %v576, 2147483648
    %v578 = vmul.f32 %v577, 1.442695
    %v579 = vpow.pop %v578
    %v580 = vadd.f32 %v579, 1.0
    %v581 = vrcp.pop %v580
    %v582 = vmul.f32 1.0, %v581
    %v583 = vtanh.pop %v576
    %v585 = vrot.slane %v491, 4
    %v587 = vmul.f32 %v582, %v585
    %589 = vrot.lane.b32.xlu0 %v583, 32
    %v590 = vpop.permute.xlu0 %589
    %v592 = vmul.f32 %v582, %v590
    %594 = vrot.lane.b32.xlu0 %v592, 32
    %v595 = vpop.permute.xlu0 %594
    %v597 = vadd.f32 %v587, %v595
    %v598 = vtanh.pop %v597
    %600 = vrot.lane.b32.xlu0 %v598, 32
    %v601 = vpop.permute.xlu0 %600
    %v603 = vmul.f32 %v582, %v601
    %v605 = vrot.slane %v603, 4
    %606 = vrot.lane.b32.xlu0 %v605, 64
    %v607 = vpop.permute.xlu0 %606
    %v608 = vsel %vm189, %v607, 0
    %610 = vmatprep.subr.mxu0 0.0
    %611 = vmatpush1.msra.mxu0 %v185
    %612 = vmatprep.subr.mxu0 0.0
    %613 = vmatpush1.msra.mxu0 %v186
    %614 = vmatprep.subr.mxu0 0.0
    %615 = vmatpush1.msra.mxu0 %v187
    %616 = vmatprep.subr.mxu0 0.0
    %617 = vmatpush1.msra.mxu0 %v188
    %618 = vmatprep.subr.mxu0 0.0
    %619 = vmatpush1.msra.mxu0 0.0
    %620 = vmatprep.subr.mxu0 0.0
    %621 = vmatpush1.msra.mxu0 0.0
    %622 = vmatprep.subr.mxu0 0.0
    %623 = vmatpush1.msra.mxu0 0.0
    %624 = vmatprep.subr.mxu0 0.0
    %625 = vmatpush1.msra.mxu0 0.0
    %626 = vmatprep.subr.mxu0 0.0
    %627 = vmatpush1.msra.mxu0 0.0
    %628 = vmatprep.subr.mxu0 0.0
    %629 = vmatpush1.msra.mxu0 0.0
    %630 = vmatprep.subr.mxu0 0.0
    %631 = vmatpush1.msra.mxu0 0.0
    %632 = vmatprep.subr.mxu0 0.0
    %633 = vmatpush1.msra.mxu0 0.0
    %634 = vmatprep.subr.mxu0 0.0
    %635 = vmatpush1.msra.mxu0 0.0
    %636 = vmatprep.subr.mxu0 0.0
    %637 = vmatpush1.msra.mxu0 0.0
    %638 = vmatprep.subr.mxu0 0.0
    %639 = vmatpush1.msra.mxu0 0.0
    %640 = vmatprep.subr.mxu0 0.0
    %641 = vmatpush1.msra.mxu0 0.0
    %642 = vmatprep.subr.mxu0 0.0
    %643 = vmatpush1.msra.mxu0 0.0
    %644 = vmatprep.subr.mxu0 0.0
    %645 = vmatpush1.msra.mxu0 0.0
    %646 = vmatprep.subr.mxu0 0.0
    %647 = vmatpush1.msra.mxu0 0.0
    %648 = vmatprep.subr.mxu0 0.0
    %649 = vmatpush1.msra.mxu0 0.0
    %650 = vmatprep.subr.mxu0 0.0
    %651 = vmatpush1.msra.mxu0 0.0
    %652 = vmatprep.subr.mxu0 0.0
    %653 = vmatpush1.msra.mxu0 0.0
    %654 = vmatprep.subr.mxu0 0.0
    %655 = vmatpush1.msra.mxu0 0.0
    %656 = vmatprep.subr.mxu0 0.0
    %657 = vmatpush1.msra.mxu0 0.0
    %658 = vmatprep.subr.mxu0 0.0
    %659 = vmatpush1.msra.mxu0 0.0
    %660 = vmatprep.subr.mxu0 0.0
    %661 = vmatpush1.msra.mxu0 0.0
    %662 = vmatprep.subr.mxu0 0.0
    %663 = vmatpush1.msra.mxu0 0.0
    %664 = vmatprep.subr.mxu0 0.0
    %665 = vmatpush1.msra.mxu0 0.0
    %666 = vmatprep.subr.mxu0 0.0
    %667 = vmatpush1.msra.mxu0 0.0
    %668 = vmatprep.subr.mxu0 0.0
    %669 = vmatpush1.msra.mxu0 0.0
    %670 = vmatprep.subr.mxu0 0.0
    %671 = vmatpush1.msra.mxu0 0.0
    %672 = vmatprep.subr.mxu0 0.0
    %673 = vmatpush1.msra.mxu0 0.0
    %674 = vmatprep.mubr.f32.mxu0 0.0
    %675 = vmatmul.mubr.f32.gmra.mrb[0].mxu0 %v608
    %v676 = vpop.f32.mrb[0].mxu0
    %v677 = vadd.f32 0.0, %v676
    %v678 = vpop.f32.mrb[0].mxu0
    %679 = vdwg.mxu0
    %v680 = vadd.f32 %v177, %v677
    %v681 = vxor.u32 %v680, 2147483648
    %v682 = vmul.f32 %v681, 1.442695
    %v683 = vpow.pop %v682
    %v684 = vadd.f32 %v683, 1.0
    %v685 = vrcp.pop %v684
    %v686 = vmul.f32 1.0, %v685
    %v687 = vtanh.pop %v680
    %v689 = vrot.slane %v597, 4
    %v691 = vmul.f32 %v686, %v689
    %693 = vrot.lane.b32.xlu0 %v687, 32
    %v694 = vpop.permute.xlu0 %693
    %v696 = vmul.f32 %v686, %v694
    %698 = vrot.lane.b32.xlu0 %v696, 32
    %v699 = vpop.permute.xlu0 %698
    %v701 = vadd.f32 %v691, %v699
    %v702 = vtanh.pop %v701
    %704 = vrot.lane.b32.xlu0 %v702, 32
    %v705 = vpop.permute.xlu0 %704
    %v707 = vmul.f32 %v686, %v705
    %709 = vrot.lane.b32.xlu0 %v707, 64
    %v710 = vpop.permute.xlu0 %709
    %v711 = vsel %vm189, %v710, 0
    %713 = vmatprep.subr.mxu0 0.0
    %714 = vmatpush1.msra.mxu0 %v185
    %715 = vmatprep.subr.mxu0 0.0
    %716 = vmatpush1.msra.mxu0 %v186
    %717 = vmatprep.subr.mxu0 0.0
    %718 = vmatpush1.msra.mxu0 %v187
    %719 = vmatprep.subr.mxu0 0.0
    %720 = vmatpush1.msra.mxu0 %v188
    %721 = vmatprep.subr.mxu0 0.0
    %722 = vmatpush1.msra.mxu0 0.0
    %723 = vmatprep.subr.mxu0 0.0
    %724 = vmatpush1.msra.mxu0 0.0
    %725 = vmatprep.subr.mxu0 0.0
    %726 = vmatpush1.msra.mxu0 0.0
    %727 = vmatprep.subr.mxu0 0.0
    %728 = vmatpush1.msra.mxu0 0.0
    %729 = vmatprep.subr.mxu0 0.0
    %730 = vmatpush1.msra.mxu0 0.0
    %731 = vmatprep.subr.mxu0 0.0
    %732 = vmatpush1.msra.mxu0 0.0
    %733 = vmatprep.subr.mxu0 0.0
    %734 = vmatpush1.msra.mxu0 0.0
    %735 = vmatprep.subr.mxu0 0.0
    %736 = vmatpush1.msra.mxu0 0.0
    %737 = vmatprep.subr.mxu0 0.0
    %738 = vmatpush1.msra.mxu0 0.0
    %739 = vmatprep.subr.mxu0 0.0
    %740 = vmatpush1.msra.mxu0 0.0
    %741 = vmatprep.subr.mxu0 0.0
    %742 = vmatpush1.msra.mxu0 0.0
    %743 = vmatprep.subr.mxu0 0.0
    %744 = vmatpush1.msra.mxu0 0.0
    %745 = vmatprep.subr.mxu0 0.0
    %746 = vmatpush1.msra.mxu0 0.0
    %747 = vmatprep.subr.mxu0 0.0
    %748 = vmatpush1.msra.mxu0 0.0
    %749 = vmatprep.subr.mxu0 0.0
    %750 = vmatpush1.msra.mxu0 0.0
    %751 = vmatprep.subr.mxu0 0.0
    %752 = vmatpush1.msra.mxu0 0.0
    %753 = vmatprep.subr.mxu0 0.0
    %754 = vmatpush1.msra.mxu0 0.0
    %755 = vmatprep.subr.mxu0 0.0
    %756 = vmatpush1.msra.mxu0 0.0
    %757 = vmatprep.subr.mxu0 0.0
    %758 = vmatpush1.msra.mxu0 0.0
    %759 = vmatprep.subr.mxu0 0.0
    %760 = vmatpush1.msra.mxu0 0.0
    %761 = vmatprep.subr.mxu0 0.0
    %762 = vmatpush1.msra.mxu0 0.0
    %763 = vmatprep.subr.mxu0 0.0
    %764 = vmatpush1.msra.mxu0 0.0
    %765 = vmatprep.subr.mxu0 0.0
    %766 = vmatpush1.msra.mxu0 0.0
    %767 = vmatprep.subr.mxu0 0.0
    %768 = vmatpush1.msra.mxu0 0.0
    %769 = vmatprep.subr.mxu0 0.0
    %770 = vmatpush1.msra.mxu0 0.0
    %771 = vmatprep.subr.mxu0 0.0
    %772 = vmatpush1.msra.mxu0 0.0
    %773 = vmatprep.subr.mxu0 0.0
    %774 = vmatpush1.msra.mxu0 0.0
    %775 = vmatprep.subr.mxu0 0.0
    %776 = vmatpush1.msra.mxu0 0.0
    %777 = vmatprep.mubr.f32.mxu0 0.0
    %778 = vmatmul.mubr.f32.gmra.mrb[0].mxu0 %v711
    %v779 = vpop.f32.mrb[0].mxu0
    %v780 = vadd.f32 0.0, %v779
    %v781 = vpop.f32.mrb[0].mxu0
    %782 = vdwg.mxu0
    %v784 = vrot.slane %v780, 4
    %v786 = vadd.f32 %v177, %v784
    %v787 = vxor.u32 %v786, 2147483648
    %v788 = vmul.f32 %v787, 1.442695
    %v789 = vpow.pop %v788
    %v790 = vadd.f32 %v789, 1.0
    %v791 = vrcp.pop %v790
    %v792 = vmul.f32 1.0, %v791
    %v793 = vtanh.pop %v786
    %v795 = vrot.slane %v701, 4
    %v797 = vmul.f32 %v792, %v795
    %799 = vrot.lane.b32.xlu0 %v793, 32
    %v800 = vpop.permute.xlu0 %799
    %v802 = vmul.f32 %v792, %v800
    %804 = vrot.lane.b32.xlu0 %v802, 32
    %v805 = vpop.permute.xlu0 %804
    %v807 = vadd.f32 %v797, %v805
    %v808 = vtanh.pop %v807
    %810 = vrot.lane.b32.xlu0 %v808, 32
    %v811 = vpop.permute.xlu0 %810
    %v813 = vmul.f32 %v792, %v811
    %v815 = vrot.slane %v813, 4
    %816 = vrot.lane.b32.xlu0 %v815, 64
    %v817 = vpop.permute.xlu0 %816
    %v818 = vsel %vm189, %v817, 0
    %820 = vmatprep.subr.mxu0 0.0
    %821 = vmatpush1.msra.mxu0 %v185
    %822 = vmatprep.subr.mxu0 0.0
    %823 = vmatpush1.msra.mxu0 %v186
    %824 = vmatprep.subr.mxu0 0.0
    %825 = vmatpush1.msra.mxu0 %v187
    %826 = vmatprep.subr.mxu0 0.0
    %827 = vmatpush1.msra.mxu0 %v188
    %828 = vmatprep.subr.mxu0 0.0
    %829 = vmatpush1.msra.mxu0 0.0
    %830 = vmatprep.subr.mxu0 0.0
    %831 = vmatpush1.msra.mxu0 0.0
    %832 = vmatprep.subr.mxu0 0.0
    %833 = vmatpush1.msra.mxu0 0.0
    %834 = vmatprep.subr.mxu0 0.0
    %835 = vmatpush1.msra.mxu0 0.0
    %836 = vmatprep.subr.mxu0 0.0
    %837 = vmatpush1.msra.mxu0 0.0
    %838 = vmatprep.subr.mxu0 0.0
    %839 = vmatpush1.msra.mxu0 0.0
    %840 = vmatprep.subr.mxu0 0.0
    %841 = vmatpush1.msra.mxu0 0.0
    %842 = vmatprep.subr.mxu0 0.0
    %843 = vmatpush1.msra.mxu0 0.0
    %844 = vmatprep.subr.mxu0 0.0
    %845 = vmatpush1.msra.mxu0 0.0
    %846 = vmatprep.subr.mxu0 0.0
    %847 = vmatpush1.msra.mxu0 0.0
    %848 = vmatprep.subr.mxu0 0.0
    %849 = vmatpush1.msra.mxu0 0.0
    %850 = vmatprep.subr.mxu0 0.0
    %851 = vmatpush1.msra.mxu0 0.0
    %852 = vmatprep.subr.mxu0 0.0
    %853 = vmatpush1.msra.mxu0 0.0
    %854 = vmatprep.subr.mxu0 0.0
    %855 = vmatpush1.msra.mxu0 0.0
    %856 = vmatprep.subr.mxu0 0.0
    %857 = vmatpush1.msra.mxu0 0.0
    %858 = vmatprep.subr.mxu0 0.0
    %859 = vmatpush1.msra.mxu0 0.0
    %860 = vmatprep.subr.mxu0 0.0
    %861 = vmatpush1.msra.mxu0 0.0
    %862 = vmatprep.subr.mxu0 0.0
    %863 = vmatpush1.msra.mxu0 0.0
    %864 = vmatprep.subr.mxu0 0.0
    %865 = vmatpush1.msra.mxu0 0.0
    %866 = vmatprep.subr.mxu0 0.0
    %867 = vmatpush1.msra.mxu0 0.0
    %868 = vmatprep.subr.mxu0 0.0
    %869 = vmatpush1.msra.mxu0 0.0
    %870 = vmatprep.subr.mxu0 0.0
    %871 = vmatpush1.msra.mxu0 0.0
    %872 = vmatprep.subr.mxu0 0.0
    %873 = vmatpush1.msra.mxu0 0.0
    %874 = vmatprep.subr.mxu0 0.0
    %875 = vmatpush1.msra.mxu0 0.0
    %876 = vmatprep.subr.mxu0 0.0
    %877 = vmatpush1.msra.mxu0 0.0
    %878 = vmatprep.subr.mxu0 0.0
    %879 = vmatpush1.msra.mxu0 0.0
    %880 = vmatprep.subr.mxu0 0.0
    %881 = vmatpush1.msra.mxu0 0.0
    %882 = vmatprep.subr.mxu0 0.0
    %883 = vmatpush1.msra.mxu0 0.0
    %884 = vmatprep.mubr.f32.mxu0 0.0
    %885 = vmatmul.mubr.f32.gmra.mrb[0].mxu0 %v818
    %v886 = vpop.f32.mrb[0].mxu0
    %v887 = vadd.f32 0.0, %v886
    %v888 = vpop.f32.mrb[0].mxu0
    %889 = vdwg.mxu0
    %v890 = vadd.f32 %v182, %v887
    %v891 = vxor.u32 %v890, 2147483648
    %v892 = vmul.f32 %v891, 1.442695
    %v893 = vpow.pop %v892
    %v894 = vadd.f32 %v893, 1.0
    %v895 = vrcp.pop %v894
    %v896 = vmul.f32 1.0, %v895
    %v897 = vtanh.pop %v890
    %v899 = vrot.slane %v807, 4
    %v901 = vmul.f32 %v896, %v899
    %903 = vrot.lane.b32.xlu0 %v897, 32
    %v904 = vpop.permute.xlu0 %903
    %v906 = vmul.f32 %v896, %v904
    %908 = vrot.lane.b32.xlu0 %v906, 32
    %v909 = vpop.permute.xlu0 %908
    %v911 = vadd.f32 %v901, %v909
    %v912 = vtanh.pop %v911
    %914 = vrot.lane.b32.xlu0 %v912, 32
    %v915 = vpop.permute.xlu0 %914
    %v917 = vmul.f32 %v896, %v915
    %919 = vrot.lane.b32.xlu0 %v917, 64
    %v920 = vpop.permute.xlu0 %919
    %v921 = vsel %vm189, %v920, 0
    %923 = vmatprep.subr.mxu0 0.0
    %924 = vmatpush1.msra.mxu0 %v185
    %925 = vmatprep.subr.mxu0 0.0
    %926 = vmatpush1.msra.mxu0 %v186
    %927 = vmatprep.subr.mxu0 0.0
    %928 = vmatpush1.msra.mxu0 %v187
    %929 = vmatprep.subr.mxu0 0.0
    %930 = vmatpush1.msra.mxu0 %v188
    %931 = vmatprep.subr.mxu0 0.0
    %932 = vmatpush1.msra.mxu0 0.0
    %933 = vmatprep.subr.mxu0 0.0
    %934 = vmatpush1.msra.mxu0 0.0
    %935 = vmatprep.subr.mxu0 0.0
    %936 = vmatpush1.msra.mxu0 0.0
    %937 = vmatprep.subr.mxu0 0.0
    %938 = vmatpush1.msra.mxu0 0.0
    %939 = vmatprep.subr.mxu0 0.0
    %940 = vmatpush1.msra.mxu0 0.0
    %941 = vmatprep.subr.mxu0 0.0
    %942 = vmatpush1.msra.mxu0 0.0
    %943 = vmatprep.subr.mxu0 0.0
    %944 = vmatpush1.msra.mxu0 0.0
    %945 = vmatprep.subr.mxu0 0.0
    %946 = vmatpush1.msra.mxu0 0.0
    %947 = vmatprep.subr.mxu0 0.0
    %948 = vmatpush1.msra.mxu0 0.0
    %949 = vmatprep.subr.mxu0 0.0
    %950 = vmatpush1.msra.mxu0 0.0
    %951 = vmatprep.subr.mxu0 0.0
    %952 = vmatpush1.msra.mxu0 0.0
    %953 = vmatprep.subr.mxu0 0.0
    %954 = vmatpush1.msra.mxu0 0.0
    %955 = vmatprep.subr.mxu0 0.0
    %956 = vmatpush1.msra.mxu0 0.0
    %957 = vmatprep.subr.mxu0 0.0
    %958 = vmatpush1.msra.mxu0 0.0
    %959 = vmatprep.subr.mxu0 0.0
    %960 = vmatpush1.msra.mxu0 0.0
    %961 = vmatprep.subr.mxu0 0.0
    %962 = vmatpush1.msra.mxu0 0.0
    %963 = vmatprep.subr.mxu0 0.0
    %964 = vmatpush1.msra.mxu0 0.0
    %965 = vmatprep.subr.mxu0 0.0
    %966 = vmatpush1.msra.mxu0 0.0
    %967 = vmatprep.subr.mxu0 0.0
    %968 = vmatpush1.msra.mxu0 0.0
    %969 = vmatprep.subr.mxu0 0.0
    %970 = vmatpush1.msra.mxu0 0.0
    %971 = vmatprep.subr.mxu0 0.0
    %972 = vmatpush1.msra.mxu0 0.0
    %973 = vmatprep.subr.mxu0 0.0
    %974 = vmatpush1.msra.mxu0 0.0
    %975 = vmatprep.subr.mxu0 0.0
    %976 = vmatpush1.msra.mxu0 0.0
    %977 = vmatprep.subr.mxu0 0.0
    %978 = vmatpush1.msra.mxu0 0.0
    %979 = vmatprep.subr.mxu0 0.0
    %980 = vmatpush1.msra.mxu0 0.0
    %981 = vmatprep.subr.mxu0 0.0
    %982 = vmatpush1.msra.mxu0 0.0
    %983 = vmatprep.subr.mxu0 0.0
    %984 = vmatpush1.msra.mxu0 0.0
    %985 = vmatprep.subr.mxu0 0.0
    %986 = vmatpush1.msra.mxu0 0.0
    %987 = vmatprep.mubr.f32.mxu0 0.0
    %988 = vmatmul.mubr.f32.gmra.mrb[0].mxu0 %v921
    %v989 = vpop.f32.mrb[0].mxu0
    %v990 = vadd.f32 0.0, %v989
    %v991 = vpop.f32.mrb[0].mxu0
    %992 = vdwg.mxu0
    %v994 = vrot.slane %v990, 4
    %v996 = vadd.f32 %v182, %v994
    %v997 = vxor.u32 %v996, 2147483648
    %v998 = vmul.f32 %v997, 1.442695
    %v999 = vpow.pop %v998
    %v1000 = vadd.f32 %v999, 1.0
    %v1001 = vrcp.pop %v1000
    %v1002 = vmul.f32 1.0, %v1001
    %v1003 = vtanh.pop %v996
    %v1005 = vrot.slane %v911, 4
    %v1007 = vmul.f32 %v1002, %v1005
    %1009 = vrot.lane.b32.xlu0 %v1003, 32
    %v1010 = vpop.permute.xlu0 %1009
    %v1012 = vmul.f32 %v1002, %v1010
    %1014 = vrot.lane.b32.xlu0 %v1012, 32
    %v1015 = vpop.permute.xlu0 %1014
    %v1017 = vadd.f32 %v1007, %v1015
    %v1018 = vtanh.pop %v1017
    %1020 = vrot.lane.b32.xlu0 %v1018, 32
    %v1021 = vpop.permute.xlu0 %1020
    %v1023 = vmul.f32 %v1002, %v1021
    %v1024 = vmax.f32 %v1023, 0.0
    %v1025 = vld [vmem:[%s4] sm:$0xff]
    %v1026 = vld [vmem:[%s4 + $0x8] sm:$0xff]
    %v1027 = vld [vmem:[%s4 + $0x10] sm:$0xff]
    %v1028 = vld [vmem:[%s4 + $0x18] sm:$0xff]
    %v1029 = vld [vmem:[%s4 + $0x20] sm:$0xff]
    %v1030 = vld [vmem:[%s4 + $0x28] sm:$0xff]
    %v1031 = vld [vmem:[%s4 + $0x30] sm:$0xff]
    %v1032 = vld [vmem:[%s4 + $0x38] sm:$0xff]
    %v1033 = vld [vmem:[%s5] sm:$0x3]
    %v1035 = vlaneseq
    %v1036 = vshrl.u32 %v1035, 7
    %v1037 = vsub.s32 0, %v1036
    %v1038 = vrot.slane %v1033, %v1037
    %v1039 = vlaneseq
    %v1040 = vshrl.u32 %v1039, 7
    %v1041 = vsub.s32 1, %v1040
    %v1042 = vrot.slane %v1033, %v1041
    %v1046 = vrot.slane %v1024, 4
    %1047 = vrot.lane.b32.xlu0 %v1046, 64
    %v1048 = vpop.permute.xlu0 %1047
    %v1049 = vsel %vm189, %v1048, 0
    %1051 = vmatprep.subr.mxu0 %v1026
    %1052 = vmatpush1.msra.mxu0 %v1025
    %1053 = vmatprep.subr.mxu0 %v1028
    %1054 = vmatpush1.msra.mxu0 %v1027
    %1055 = vmatprep.subr.mxu0 %v1030
    %1056 = vmatpush1.msra.mxu0 %v1029
    %1057 = vmatprep.subr.mxu0 %v1032
    %1058 = vmatpush1.msra.mxu0 %v1031
    %1059 = vmatprep.subr.mxu0 0.0
    %1060 = vmatpush1.msra.mxu0 0.0
    %1061 = vmatprep.subr.mxu0 0.0
    %1062 = vmatpush1.msra.mxu0 0.0
    %1063 = vmatprep.subr.mxu0 0.0
    %1064 = vmatpush1.msra.mxu0 0.0
    %1065 = vmatprep.subr.mxu0 0.0
    %1066 = vmatpush1.msra.mxu0 0.0
    %1067 = vmatprep.subr.mxu0 0.0
    %1068 = vmatpush1.msra.mxu0 0.0
    %1069 = vmatprep.subr.mxu0 0.0
    %1070 = vmatpush1.msra.mxu0 0.0
    %1071 = vmatprep.subr.mxu0 0.0
    %1072 = vmatpush1.msra.mxu0 0.0
    %1073 = vmatprep.subr.mxu0 0.0
    %1074 = vmatpush1.msra.mxu0 0.0
    %1075 = vmatprep.subr.mxu0 0.0
    %1076 = vmatpush1.msra.mxu0 0.0
    %1077 = vmatprep.subr.mxu0 0.0
    %1078 = vmatpush1.msra.mxu0 0.0
    %1079 = vmatprep.subr.mxu0 0.0
    %1080 = vmatpush1.msra.mxu0 0.0
    %1081 = vmatprep.subr.mxu0 0.0
    %1082 = vmatpush1.msra.mxu0 0.0
    %1083 = vmatprep.subr.mxu0 0.0
    %1084 = vmatpush1.msra.mxu0 0.0
    %1085 = vmatprep.subr.mxu0 0.0
    %1086 = vmatpush1.msra.mxu0 0.0
    %1087 = vmatprep.subr.mxu0 0.0
    %1088 = vmatpush1.msra.mxu0 0.0
    %1089 = vmatprep.subr.mxu0 0.0
    %1090 = vmatpush1.msra.mxu0 0.0
    %1091 = vmatprep.subr.mxu0 0.0
    %1092 = vmatpush1.msra.mxu0 0.0
    %1093 = vmatprep.subr.mxu0 0.0
    %1094 = vmatpush1.msra.mxu0 0.0
    %1095 = vmatprep.subr.mxu0 0.0
    %1096 = vmatpush1.msra.mxu0 0.0
    %1097 = vmatprep.subr.mxu0 0.0
    %1098 = vmatpush1.msra.mxu0 0.0
    %1099 = vmatprep.subr.mxu0 0.0
    %1100 = vmatpush1.msra.mxu0 0.0
    %1101 = vmatprep.subr.mxu0 0.0
    %1102 = vmatpush1.msra.mxu0 0.0
    %1103 = vmatprep.subr.mxu0 0.0
    %1104 = vmatpush1.msra.mxu0 0.0
    %1105 = vmatprep.subr.mxu0 0.0
    %1106 = vmatpush1.msra.mxu0 0.0
    %1107 = vmatprep.subr.mxu0 0.0
    %1108 = vmatpush1.msra.mxu0 0.0
    %1109 = vmatprep.subr.mxu0 0.0
    %1110 = vmatpush1.msra.mxu0 0.0
    %1111 = vmatprep.subr.mxu0 0.0
    %1112 = vmatpush1.msra.mxu0 0.0
    %1113 = vmatprep.subr.mxu0 0.0
    %1114 = vmatpush1.msra.mxu0 0.0
    %1115 = vmatprep.mubr.f32.mxu0 0.0
    %1116 = vmatmul.mubr.f32.gmra.mrb[0].mxu0 %v1049
    %v1117 = vpop.f32.mrb[0].mxu0
    %v1118 = vadd.f32 %v1038, %v1117
    %v1119 = vpop.f32.mrb[0].mxu0
    %v1120 = vadd.f32 %v1042, %v1119
    %1121 = vdwg.mxu0
    %v1122 = vld [vmem:[#allocation2] sm:$0xff]
    %v1123 = vld [vmem:[#allocation2 + $0x8] sm:$0xff]
    %v1124 = vld [vmem:[#allocation2 + $0x10] sm:$0xff]
    %v1125 = vld [vmem:[#allocation2 + $0x18] sm:$0xff]
    %v1126 = vld [vmem:[#allocation2 + $0x20] sm:$0xff]
    %v1127 = vld [vmem:[#allocation2 + $0x28] sm:$0xff]
    %v1128 = vld [vmem:[#allocation2 + $0x30] sm:$0xff]
    %v1129 = vld [vmem:[#allocation2 + $0x38] sm:$0xff]
    %v1130 = vld [vmem:[#allocation2 + $0x40] sm:$0xff]
    %v1131 = vld [vmem:[#allocation2 + $0x48] sm:$0xff]
    %v1132 = vld [vmem:[#allocation2 + $0x50] sm:$0xff]
    %v1133 = vld [vmem:[#allocation2 + $0x58] sm:$0xff]
    %v1134 = vld [vmem:[#allocation2 + $0x60] sm:$0xff]
    %v1135 = vld [vmem:[#allocation2 + $0x68] sm:$0xff]
    %v1136 = vld [vmem:[#allocation2 + $0x70] sm:$0xff]
    %v1137 = vld [vmem:[#allocation2 + $0x78] sm:$0xff]
    %v1138 = vld [vmem:[#allocation2 + $0x80] sm:$0xff]
    %v1139 = vld [vmem:[#allocation2 + $0x88] sm:$0xff]
    %v1140 = vld [vmem:[#allocation2 + $0x90] sm:$0xff]
    %v1141 = vld [vmem:[#allocation2 + $0x98] sm:$0xff]
    %v1142 = vld [vmem:[#allocation2 + $0xa0] sm:$0xff]
    %v1143 = vld [vmem:[#allocation2 + $0xa8] sm:$0xff]
    %v1144 = vld [vmem:[#allocation2 + $0xb0] sm:$0xff]
    %v1145 = vld [vmem:[#allocation2 + $0xb8] sm:$0xff]
    %v1146 = vld [vmem:[#allocation2 + $0xc0] sm:$0xff]
    %v1147 = vld [vmem:[#allocation2 + $0xc8] sm:$0xff]
    %v1148 = vld [vmem:[#allocation2 + $0xd0] sm:$0xff]
    %v1149 = vld [vmem:[#allocation2 + $0xd8] sm:$0xff]
    %v1150 = vld [vmem:[#allocation2 + $0xe0] sm:$0xff]
    %v1151 = vld [vmem:[#allocation2 + $0xe8] sm:$0xff]
    %v1152 = vld [vmem:[#allocation2 + $0xf0] sm:$0xff]
    %v1153 = vld [vmem:[#allocation2 + $0xf8] sm:$0xff]
    %v1154 = vld [vmem:[#allocation2 + $0x100] sm:$0xff]
    %v1155 = vld [vmem:[#allocation2 + $0x108] sm:$0xff]
    %v1156 = vld [vmem:[#allocation2 + $0x110] sm:$0xff]
    %v1157 = vld [vmem:[#allocation2 + $0x118] sm:$0xff]
    %v1158 = vld [vmem:[#allocation2 + $0x120] sm:$0xff]
    %v1159 = vld [vmem:[#allocation2 + $0x128] sm:$0xff]
    %v1160 = vld [vmem:[#allocation2 + $0x130] sm:$0xff]
    %v1161 = vld [vmem:[#allocation2 + $0x138] sm:$0xff]
    %v1162 = vld [vmem:[#allocation2 + $0x140] sm:$0xff]
    %v1163 = vld [vmem:[#allocation2 + $0x148] sm:$0xff]
    %v1164 = vld [vmem:[#allocation2 + $0x150] sm:$0xff]
    %v1165 = vld [vmem:[#allocation2 + $0x158] sm:$0xff]
    %v1166 = vld [vmem:[#allocation2 + $0x160] sm:$0xff]
    %v1167 = vld [vmem:[#allocation2 + $0x168] sm:$0xff]
    %v1168 = vld [vmem:[#allocation2 + $0x170] sm:$0xff]
    %v1169 = vld [vmem:[#allocation2 + $0x178] sm:$0xff]
    %v1170 = vld [vmem:[#allocation2 + $0x180] sm:$0xff]
    %v1171 = vld [vmem:[#allocation2 + $0x188] sm:$0xff]
    %v1172 = vld [vmem:[#allocation2 + $0x190] sm:$0xff]
    %v1173 = vld [vmem:[#allocation2 + $0x198] sm:$0xff]
    %v1174 = vld [vmem:[#allocation2 + $0x1a0] sm:$0xff]
    %v1175 = vld [vmem:[#allocation2 + $0x1a8] sm:$0xff]
    %v1176 = vld [vmem:[#allocation2 + $0x1b0] sm:$0xff]
    %v1177 = vld [vmem:[#allocation2 + $0x1b8] sm:$0xff]
    %v1178 = vld [vmem:[#allocation2 + $0x1c0] sm:$0xff]
    %v1179 = vld [vmem:[#allocation2 + $0x1c8] sm:$0xff]
    %v1180 = vld [vmem:[#allocation2 + $0x1d0] sm:$0xff]
    %v1181 = vld [vmem:[#allocation2 + $0x1d8] sm:$0xff]
    %v1182 = vld [vmem:[#allocation2 + $0x1e0] sm:$0xff]
    %v1183 = vld [vmem:[#allocation2 + $0x1e8] sm:$0xff]
    %v1184 = vld [vmem:[#allocation2 + $0x1f0] sm:$0xff]
    %v1185 = vld [vmem:[#allocation2 + $0x1f8] sm:$0xff]
    %v1186 = vld [vmem:[%s7] sm:$0x3]
    %v1188 = vlaneseq
    %v1189 = vshrl.u32 %v1188, 7
    %v1190 = vsub.s32 0, %v1189
    %v1191 = vrot.slane %v1186, %v1190
    %v1192 = vlaneseq
    %v1193 = vshrl.u32 %v1192, 7
    %v1194 = vsub.s32 1, %v1193
    %v1195 = vrot.slane %v1186, %v1194
    %1198 = vmatprep.subr.mxu0 %v1123
    %1199 = vmatpush1.msra.mxu0 %v1122
    %1200 = vmatprep.subr.mxu0 %v1125
    %1201 = vmatpush1.msra.mxu0 %v1124
    %1202 = vmatprep.subr.mxu0 %v1127
    %1203 = vmatpush1.msra.mxu0 %v1126
    %1204 = vmatprep.subr.mxu0 %v1129
    %1205 = vmatpush1.msra.mxu0 %v1128
    %1206 = vmatprep.subr.mxu0 %v1131
    %1207 = vmatpush1.msra.mxu0 %v1130
    %1208 = vmatprep.subr.mxu0 %v1133
    %1209 = vmatpush1.msra.mxu0 %v1132
    %1210 = vmatprep.subr.mxu0 %v1135
    %1211 = vmatpush1.msra.mxu0 %v1134
    %1212 = vmatprep.subr.mxu0 %v1137
    %1213 = vmatpush1.msra.mxu0 %v1136
    %1214 = vmatprep.subr.mxu0 %v1139
    %1215 = vmatpush1.msra.mxu0 %v1138
    %1216 = vmatprep.subr.mxu0 %v1141
    %1217 = vmatpush1.msra.mxu0 %v1140
    %1218 = vmatprep.subr.mxu0 %v1143
    %1219 = vmatpush1.msra.mxu0 %v1142
    %1220 = vmatprep.subr.mxu0 %v1145
    %1221 = vmatpush1.msra.mxu0 %v1144
    %1222 = vmatprep.subr.mxu0 %v1147
    %1223 = vmatpush1.msra.mxu0 %v1146
    %1224 = vmatprep.subr.mxu0 %v1149
    %1225 = vmatpush1.msra.mxu0 %v1148
    %1226 = vmatprep.subr.mxu0 %v1151
    %1227 = vmatpush1.msra.mxu0 %v1150
    %1228 = vmatprep.subr.mxu0 %v1153
    %1229 = vmatpush1.msra.mxu0 %v1152
    %1230 = vmatprep.subr.mxu0 %v1155
    %1231 = vmatpush1.msra.mxu0 %v1154
    %1232 = vmatprep.subr.mxu0 %v1157
    %1233 = vmatpush1.msra.mxu0 %v1156
    %1234 = vmatprep.subr.mxu0 %v1159
    %1235 = vmatpush1.msra.mxu0 %v1158
    %1236 = vmatprep.subr.mxu0 %v1161
    %1237 = vmatpush1.msra.mxu0 %v1160
    %1238 = vmatprep.subr.mxu0 %v1163
    %1239 = vmatpush1.msra.mxu0 %v1162
    %1240 = vmatprep.subr.mxu0 %v1165
    %1241 = vmatpush1.msra.mxu0 %v1164
    %1242 = vmatprep.subr.mxu0 %v1167
    %1243 = vmatpush1.msra.mxu0 %v1166
    %1244 = vmatprep.subr.mxu0 %v1169
    %1245 = vmatpush1.msra.mxu0 %v1168
    %1246 = vmatprep.subr.mxu0 %v1171
    %1247 = vmatpush1.msra.mxu0 %v1170
    %1248 = vmatprep.subr.mxu0 %v1173
    %1249 = vmatpush1.msra.mxu0 %v1172
    %1250 = vmatprep.subr.mxu0 %v1175
    %1251 = vmatpush1.msra.mxu0 %v1174
    %1252 = vmatprep.subr.mxu0 %v1177
    %1253 = vmatpush1.msra.mxu0 %v1176
    %1254 = vmatprep.subr.mxu0 %v1179
    %1255 = vmatpush1.msra.mxu0 %v1178
    %1256 = vmatprep.subr.mxu0 %v1181
    %1257 = vmatpush1.msra.mxu0 %v1180
    %1258 = vmatprep.subr.mxu0 %v1183
    %1259 = vmatpush1.msra.mxu0 %v1182
    %1260 = vmatprep.subr.mxu0 %v1185
    %1261 = vmatpush1.msra.mxu0 %v1184
    %1262 = vmatprep.mubr.f32.mxu0 %v1120
    %1263 = vmatmul.mubr.f32.gmra.mrb[0].mxu0 %v1118
    %v1264 = vpop.f32.mrb[0].mxu0
    %v1265 = vadd.f32 %v1191, %v1264
    %v1266 = vpop.f32.mrb[0].mxu0
    %v1267 = vadd.f32 %v1195, %v1266
    %1268 = vdwg.mxu0
    %v1269 = vld [vmem:[#allocation5] sm:$0xff]
    %v1270 = vld [vmem:[#allocation5 + $0x8] sm:$0xff]
    %v1271 = vld [vmem:[#allocation5 + $0x10] sm:$0xff]
    %v1272 = vld [vmem:[#allocation5 + $0x18] sm:$0xff]
    %v1273 = vld [vmem:[#allocation5 + $0x20] sm:$0xff]
    %v1274 = vld [vmem:[#allocation5 + $0x28] sm:$0xff]
    %v1275 = vld [vmem:[#allocation5 + $0x30] sm:$0xff]
    %v1276 = vld [vmem:[#allocation5 + $0x38] sm:$0xff]
    %v1277 = vld [vmem:[#allocation5 + $0x40] sm:$0xff]
    %v1278 = vld [vmem:[#allocation5 + $0x48] sm:$0xff]
    %v1279 = vld [vmem:[#allocation5 + $0x50] sm:$0xff]
    %v1280 = vld [vmem:[#allocation5 + $0x58] sm:$0xff]
    %v1281 = vld [vmem:[#allocation5 + $0x60] sm:$0xff]
    %v1282 = vld [vmem:[#allocation5 + $0x68] sm:$0xff]
    %v1283 = vld [vmem:[#allocation5 + $0x70] sm:$0xff]
    %v1284 = vld [vmem:[#allocation5 + $0x78] sm:$0xff]
    %v1285 = vld [vmem:[#allocation5 + $0x80] sm:$0xff]
    %v1286 = vld [vmem:[#allocation5 + $0x88] sm:$0xff]
    %v1287 = vld [vmem:[#allocation5 + $0x90] sm:$0xff]
    %v1288 = vld [vmem:[#allocation5 + $0x98] sm:$0xff]
    %v1289 = vld [vmem:[#allocation5 + $0xa0] sm:$0xff]
    %v1290 = vld [vmem:[#allocation5 + $0xa8] sm:$0xff]
    %v1291 = vld [vmem:[#allocation5 + $0xb0] sm:$0xff]
    %v1292 = vld [vmem:[#allocation5 + $0xb8] sm:$0xff]
    %v1293 = vld [vmem:[#allocation5 + $0xc0] sm:$0xff]
    %v1294 = vld [vmem:[#allocation5 + $0xc8] sm:$0xff]
    %v1295 = vld [vmem:[#allocation5 + $0xd0] sm:$0xff]
    %v1296 = vld [vmem:[#allocation5 + $0xd8] sm:$0xff]
    %v1297 = vld [vmem:[#allocation5 + $0xe0] sm:$0xff]
    %v1298 = vld [vmem:[#allocation5 + $0xe8] sm:$0xff]
    %v1299 = vld [vmem:[#allocation5 + $0xf0] sm:$0xff]
    %v1300 = vld [vmem:[#allocation5 + $0xf8] sm:$0xff]
    %v1301 = vld [vmem:[%s9] sm:$0x1]
    %v1303 = vlaneseq
    %v1304 = vshrl.u32 %v1303, 7
    %v1305 = vsub.s32 0, %v1304
    %v1306 = vrot.slane %v1301, %v1305
    %1308 = vmatprep.subr.mxu0 0.0
    %1309 = vmatpush1.msra.mxu0 %v1269
    %1310 = vmatprep.subr.mxu0 0.0
    %1311 = vmatpush1.msra.mxu0 %v1270
    %1312 = vmatprep.subr.mxu0 0.0
    %1313 = vmatpush1.msra.mxu0 %v1271
    %1314 = vmatprep.subr.mxu0 0.0
    %1315 = vmatpush1.msra.mxu0 %v1272
    %1316 = vmatprep.subr.mxu0 0.0
    %1317 = vmatpush1.msra.mxu0 %v1273
    %1318 = vmatprep.subr.mxu0 0.0
    %1319 = vmatpush1.msra.mxu0 %v1274
    %1320 = vmatprep.subr.mxu0 0.0
    %1321 = vmatpush1.msra.mxu0 %v1275
    %1322 = vmatprep.subr.mxu0 0.0
    %1323 = vmatpush1.msra.mxu0 %v1276
    %1324 = vmatprep.subr.mxu0 0.0
    %1325 = vmatpush1.msra.mxu0 %v1277
    %1326 = vmatprep.subr.mxu0 0.0
    %1327 = vmatpush1.msra.mxu0 %v1278
    %1328 = vmatprep.subr.mxu0 0.0
    %1329 = vmatpush1.msra.mxu0 %v1279
    %1330 = vmatprep.subr.mxu0 0.0
    %1331 = vmatpush1.msra.mxu0 %v1280
    %1332 = vmatprep.subr.mxu0 0.0
    %1333 = vmatpush1.msra.mxu0 %v1281
    %1334 = vmatprep.subr.mxu0 0.0
    %1335 = vmatpush1.msra.mxu0 %v1282
    %1336 = vmatprep.subr.mxu0 0.0
    %1337 = vmatpush1.msra.mxu0 %v1283
    %1338 = vmatprep.subr.mxu0 0.0
    %1339 = vmatpush1.msra.mxu0 %v1284
    %1340 = vmatprep.subr.mxu0 0.0
    %1341 = vmatpush1.msra.mxu0 %v1285
    %1342 = vmatprep.subr.mxu0 0.0
    %1343 = vmatpush1.msra.mxu0 %v1286
    %1344 = vmatprep.subr.mxu0 0.0
    %1345 = vmatpush1.msra.mxu0 %v1287
    %1346 = vmatprep.subr.mxu0 0.0
    %1347 = vmatpush1.msra.mxu0 %v1288
    %1348 = vmatprep.subr.mxu0 0.0
    %1349 = vmatpush1.msra.mxu0 %v1289
    %1350 = vmatprep.subr.mxu0 0.0
    %1351 = vmatpush1.msra.mxu0 %v1290
    %1352 = vmatprep.subr.mxu0 0.0
    %1353 = vmatpush1.msra.mxu0 %v1291
    %1354 = vmatprep.subr.mxu0 0.0
    %1355 = vmatpush1.msra.mxu0 %v1292
    %1356 = vmatprep.subr.mxu0 0.0
    %1357 = vmatpush1.msra.mxu0 %v1293
    %1358 = vmatprep.subr.mxu0 0.0
    %1359 = vmatpush1.msra.mxu0 %v1294
    %1360 = vmatprep.subr.mxu0 0.0
    %1361 = vmatpush1.msra.mxu0 %v1295
    %1362 = vmatprep.subr.mxu0 0.0
    %1363 = vmatpush1.msra.mxu0 %v1296
    %1364 = vmatprep.subr.mxu0 0.0
    %1365 = vmatpush1.msra.mxu0 %v1297
    %1366 = vmatprep.subr.mxu0 0.0
    %1367 = vmatpush1.msra.mxu0 %v1298
    %1368 = vmatprep.subr.mxu0 0.0
    %1369 = vmatpush1.msra.mxu0 %v1299
    %1370 = vmatprep.subr.mxu0 0.0
    %1371 = vmatpush1.msra.mxu0 %v1300
    %1372 = vmatprep.mubr.f32.mxu0 %v1267
    %1373 = vmatmul.mubr.f32.gmra.mrb[0].mxu0 %v1265
    %v1374 = vpop.f32.mrb[0].mxu0
    %v1375 = vadd.f32 %v1306, %v1374
    %v1376 = vpop.f32.mrb[0].mxu0
    %1377 = vdwg.mxu0
    %v1378 = vmax.f32 %v1375, 0.0
    %v1379 = vld [vmem:[%s10] sm:$0xff]
    %v1380 = vld [vmem:[%s10 + $0x8] sm:$0xff]
    %v1381 = vld [vmem:[%s10 + $0x10] sm:$0xff]
    %v1382 = vld [vmem:[%s10 + $0x18] sm:$0xff]
    %v1383 = vld [vmem:[%s10 + $0x20] sm:$0xff]
    %v1384 = vld [vmem:[%s10 + $0x28] sm:$0xff]
    %v1385 = vld [vmem:[%s10 + $0x30] sm:$0xff]
    %v1386 = vld [vmem:[%s10 + $0x38] sm:$0xff]
    %v1387 = vld [vmem:[%s10 + $0x40] sm:$0xff]
    %v1388 = vld [vmem:[%s10 + $0x48] sm:$0xff]
    %v1389 = vld [vmem:[%s10 + $0x50] sm:$0xff]
    %v1390 = vld [vmem:[%s10 + $0x58] sm:$0xff]
    %v1391 = vld [vmem:[%s10 + $0x60] sm:$0xff]
    %v1392 = vld [vmem:[%s10 + $0x68] sm:$0xff]
    %v1393 = vld [vmem:[%s10 + $0x70] sm:$0xff]
    %v1394 = vld [vmem:[%s10 + $0x78] sm:$0xff]
    %v1395 = vld [vmem:[%s11] sm:$0x1]
    %v1397 = vlaneseq
    %v1398 = vshrl.u32 %v1397, 7
    %v1399 = vsub.s32 0, %v1398
    %v1400 = vrot.slane %v1395, %v1399
    %1402 = vmatprep.subr.mxu0 0.0
    %1403 = vmatpush1.msra.mxu0 %v1379
    %1404 = vmatprep.subr.mxu0 0.0
    %1405 = vmatpush1.msra.mxu0 %v1380
    %1406 = vmatprep.subr.mxu0 0.0
    %1407 = vmatpush1.msra.mxu0 %v1381
    %1408 = vmatprep.subr.mxu0 0.0
    %1409 = vmatpush1.msra.mxu0 %v1382
    %1410 = vmatprep.subr.mxu0 0.0
    %1411 = vmatpush1.msra.mxu0 %v1383
    %1412 = vmatprep.subr.mxu0 0.0
    %1413 = vmatpush1.msra.mxu0 %v1384
    %1414 = vmatprep.subr.mxu0 0.0
    %1415 = vmatpush1.msra.mxu0 %v1385
    %1416 = vmatprep.subr.mxu0 0.0
    %1417 = vmatpush1.msra.mxu0 %v1386
    %1418 = vmatprep.subr.mxu0 0.0
    %1419 = vmatpush1.msra.mxu0 %v1387
    %1420 = vmatprep.subr.mxu0 0.0
    %1421 = vmatpush1.msra.mxu0 %v1388
    %1422 = vmatprep.subr.mxu0 0.0
    %1423 = vmatpush1.msra.mxu0 %v1389
    %1424 = vmatprep.subr.mxu0 0.0
    %1425 = vmatpush1.msra.mxu0 %v1390
    %1426 = vmatprep.subr.mxu0 0.0
    %1427 = vmatpush1.msra.mxu0 %v1391
    %1428 = vmatprep.subr.mxu0 0.0
    %1429 = vmatpush1.msra.mxu0 %v1392
    %1430 = vmatprep.subr.mxu0 0.0
    %1431 = vmatpush1.msra.mxu0 %v1393
    %1432 = vmatprep.subr.mxu0 0.0
    %1433 = vmatpush1.msra.mxu0 %v1394
    %1434 = vmatprep.subr.mxu0 0.0
    %1435 = vmatpush1.msra.mxu0 0.0
    %1436 = vmatprep.subr.mxu0 0.0
    %1437 = vmatpush1.msra.mxu0 0.0
    %1438 = vmatprep.subr.mxu0 0.0
    %1439 = vmatpush1.msra.mxu0 0.0
    %1440 = vmatprep.subr.mxu0 0.0
    %1441 = vmatpush1.msra.mxu0 0.0
    %1442 = vmatprep.subr.mxu0 0.0
    %1443 = vmatpush1.msra.mxu0 0.0
    %1444 = vmatprep.subr.mxu0 0.0
    %1445 = vmatpush1.msra.mxu0 0.0
    %1446 = vmatprep.subr.mxu0 0.0
    %1447 = vmatpush1.msra.mxu0 0.0
    %1448 = vmatprep.subr.mxu0 0.0
    %1449 = vmatpush1.msra.mxu0 0.0
    %1450 = vmatprep.subr.mxu0 0.0
    %1451 = vmatpush1.msra.mxu0 0.0
    %1452 = vmatprep.subr.mxu0 0.0
    %1453 = vmatpush1.msra.mxu0 0.0
    %1454 = vmatprep.subr.mxu0 0.0
    %1455 = vmatpush1.msra.mxu0 0.0
    %1456 = vmatprep.subr.mxu0 0.0
    %1457 = vmatpush1.msra.mxu0 0.0
    %1458 = vmatprep.subr.mxu0 0.0
    %1459 = vmatpush1.msra.mxu0 0.0
    %1460 = vmatprep.subr.mxu0 0.0
    %1461 = vmatpush1.msra.mxu0 0.0
    %1462 = vmatprep.subr.mxu0 0.0
    %1463 = vmatpush1.msra.mxu0 0.0
    %1464 = vmatprep.subr.mxu0 0.0
    %1465 = vmatpush1.msra.mxu0 0.0
    %1466 = vmatprep.mubr.f32.mxu0 0.0
    %1467 = vmatmul.mubr.f32.gmra.mrb[0].mxu0 %v1378
    %v1468 = vpop.f32.mrb[0].mxu0
    %v1469 = vadd.f32 %v1400, %v1468
    %v1470 = vpop.f32.mrb[0].mxu0
    %1471 = vdwg.mxu0
    %vm1472 = vcmask 27648
    %1473 = vst.msk [vmem:[#allocation7] sm:$0xf] %vm1472, %v1469
    // Predicated region
    $region58: #{lstm_module_forward.1} parent=1 // pred_check
      _
    $region59: #{lstm_module_forward.1} parent=1 // pred_check_branch
      %1475 = sbr.rel (0) target = $region61
    $region60: #{lstm_module_forward.1} parent=1 // pred_region
      %s1477 = ssub.s32 64, 64
      %1478 = vsyncadd [#allocation4], %s1477
      %s1480 = sshll.u32 [#allocation7], 4
      %s1481 = int_to_ptr.vmem [resolvable:$true] %s1480
      %1483 = dma.vmem_to_hbm [thread:$0]  %s1481, 64, %s12, [#allocation4]
    $region61: #{lstm_module_forward.1} parent=1 // pred_fallthru
      _
    // Predicated region
    $region62: #{lstm_module_forward.1} parent=1 // pred_check
      _
    $region63: #{lstm_module_forward.1} parent=1 // pred_check_branch
      %1485 = sbr.rel (0) target = $region65
    $region64: #{lstm_module_forward.1} parent=1 // pred_region
      %1486 = dma.done [#allocation4], 64
    $region65: #{lstm_module_forward.1} parent=1 // pred_fallthru
      _
    %1487 = vsyncpa [#allocation3], 1
    %1488 = vsyncpa [#allocation6], 1
    %1489 = vsyncpa [#allocation4], 1

</llo_original>
